<compile_context>
chip_gen: v5e
topology: v5e:2x2
jax: 0.10.0
libtpu: 0.0.40
codegen_flags: <defaults>
</compile_context>

<pallas_src>
import math

import jax
import jax.numpy as jnp
from jax.experimental import pallas as pl
from jax.experimental.pallas import tpu as pltpu

# ---- small config consistent with the module (defaults shrunk) -------------
INPUT_DIM = 3          # module default 3
SEQ_LEN = 8            # module default 468 (shrunk)
EMBED_DIM = 32         # module default 512 (shrunk)
NUM_HEADS = 4          # module default 12
HEAD_DIM = EMBED_DIM // NUM_HEADS
NUM_LAYERS = 2         # module default 6 (shrunk)
FFN_DIM = 64           # nn.TransformerEncoderLayer default 2048 (shrunk)
NUM_CLASSES = 6
C_PAD = 128            # lane-dense padded classifier width
LN_EPS = 1e-5
BATCH = 2


def _layer_norm(x, gamma, beta):
    mu = jnp.mean(x, axis=-1, keepdims=True)
    var = jnp.mean((x - mu) ** 2, axis=-1, keepdims=True)
    return (x - mu) * jax.lax.rsqrt(var + LN_EPS) * gamma + beta


def _encoder_kernel(
    h0_ref,                                  # (1, S, E)      bf16  per-batch
    wq_ref, wk_ref, wv_ref,                  # (1, H, E, Dh)  bf16  per-layer
    bq_ref, bk_ref, bv_ref,                  # (1, H, 1, Dh)  f32   per-layer
    wo_ref, bo_ref,                          # (1, E, E) bf16, (1, 1, E) f32
    ln1g_ref, ln1b_ref,                      # (1, 1, E) f32 each   per-layer
    w1_ref, b1_ref,                          # (1, E, F) bf16, (1, 1, F) f32
    w2_ref, b2_ref,                          # (1, F, E) bf16, (1, 1, E) f32
    ln2g_ref, ln2b_ref,                      # (1, 1, E) f32 each   per-layer
    wfc_ref, bfc_ref,                        # (E, C_PAD) bf16, (1, C_PAD) f32
    out_ref,                                 # (1, 1, C_PAD)  f32   per-batch
    h_ref,                                   # VMEM scratch (S, E) bf16
):
    layer = pl.program_id(1)
    n_layers = pl.num_programs(1)

    # Seed the resident residual-stream scratch at the first layer of each row.
    @pl.when(layer == 0)
    def _():
        h_ref[...] = h0_ref[0]

    h_bf = h_ref[...]                                   # (S, E) bf16
    h_f32 = h_bf.astype(jnp.float32)

    # --- multi-head self-attention (softmax scale pre-folded into W_q/b_q) ---
    ctx_parts = []
    for hh in range(NUM_HEADS):
        q = jnp.dot(h_bf, wq_ref[0, hh],
                    preferred_element_type=jnp.float32) + bq_ref[0, hh]
        k = jnp.dot(h_bf, wk_ref[0, hh],
                    preferred_element_type=jnp.float32) + bk_ref[0, hh]
        v = jnp.dot(h_bf, wv_ref[0, hh],
                    preferred_element_type=jnp.float32) + bv_ref[0, hh]
        # s = q @ k.T  (contract last dims, no explicit transpose op)
        s = jax.lax.dot_general(q.astype(jnp.bfloat16), k.astype(jnp.bfloat16),
                                (((1,), (1,)), ((), ())),
                                preferred_element_type=jnp.float32)   # (S, S)
        s = s - jnp.max(s, axis=-1, keepdims=True)
        p = jnp.exp(s)
        p = p * pl.reciprocal(jnp.sum(p, axis=-1, keepdims=True), approx=True)
        ctx = jnp.dot(p.astype(jnp.bfloat16), v.astype(jnp.bfloat16),
                      preferred_element_type=jnp.float32)             # (S, Dh)
        ctx_parts.append(ctx)
    # Single full-width output projection (K = E) instead of H narrow ones.
    ctx_all = jnp.concatenate(ctx_parts, axis=-1)                     # (S, E)
    attn = jnp.dot(ctx_all.astype(jnp.bfloat16), wo_ref[0],
                   preferred_element_type=jnp.float32) + bo_ref[0]

    # residual + norm1 (f32)
    h1 = _layer_norm(h_f32 + attn, ln1g_ref[0], ln1b_ref[0])

    # --- feed-forward (ReLU) ---
    ff = jnp.dot(h1.astype(jnp.bfloat16), w1_ref[0],
                 preferred_element_type=jnp.float32) + b1_ref[0]
    ff = jnp.maximum(ff, 0.0)
    ff = jnp.dot(ff.astype(jnp.bfloat16), w2_ref[0],
                 preferred_element_type=jnp.float32) + b2_ref[0]

    # residual + norm2 (f32), store residual stream back in bf16
    h2 = _layer_norm(h1 + ff, ln2g_ref[0], ln2b_ref[0])
    h_ref[...] = h2.astype(jnp.bfloat16)

    # --- last layer: mean over sequence + classifier (lane-dense padded) ---
    @pl.when(layer == n_layers - 1)
    def _():
        pooled = jnp.mean(h2, axis=0, keepdims=True)                  # (1, E)
        out_ref[0] = (jnp.dot(pooled.astype(jnp.bfloat16), wfc_ref[...],
                              preferred_element_type=jnp.float32)
                      + bfc_ref[...])                                 # (1, C_PAD)


def face_emotion_transformer(x, params):
    """x: (B, S, INPUT_DIM) float32 -> (B, NUM_CLASSES) float32."""
    b = x.shape[0]
    assert x.shape == (b, SEQ_LEN, INPUT_DIM)
    E, H, Dh, L, F = EMBED_DIM, NUM_HEADS, HEAD_DIM, NUM_LAYERS, FFN_DIM

    # Embedding (K=INPUT_DIM=3) runs as plain XLA in the wrapper.
    h0 = (jnp.einsum("bsd,de->bse", x, params["w_emb"])
          + params["b_emb"][0]).astype(jnp.bfloat16)                  # (B, S, E)

    # Pre-split the in-projection per head; fold the softmax scale into Q.
    scale = 1.0 / math.sqrt(Dh)
    w_in, b_in = params["w_in"], params["b_in"]          # (L, E, 3E), (L, 1, 3E)

    def heads_w(w):                                      # (L, E, E) -> (L, H, E, Dh)
        return jnp.transpose(w.reshape(L, E, H, Dh), (0, 2, 1, 3))

    def heads_b(bb):                                     # (L, 1, E) -> (L, H, 1, Dh)
        return jnp.transpose(bb.reshape(L, 1, H, Dh), (0, 2, 1, 3))

    wq = heads_w(w_in[:, :, 0 * E:1 * E] * scale).astype(jnp.bfloat16)
    wk = heads_w(w_in[:, :, 1 * E:2 * E]).astype(jnp.bfloat16)
    wv = heads_w(w_in[:, :, 2 * E:3 * E]).astype(jnp.bfloat16)
    bq = heads_b(b_in[:, :, 0 * E:1 * E] * scale)
    bk = heads_b(b_in[:, :, 1 * E:2 * E])
    bv = heads_b(b_in[:, :, 2 * E:3 * E])

    w_o = params["w_o"].astype(jnp.bfloat16)
    w1 = params["w1"].astype(jnp.bfloat16)
    w2 = params["w2"].astype(jnp.bfloat16)

    # Lane-dense (128-wide) padded classifier weights; slice back after.
    w_fc = jnp.zeros((E, C_PAD), jnp.float32).at[:, :NUM_CLASSES] \
              .set(params["w_fc"]).astype(jnp.bfloat16)
    b_fc = jnp.zeros((1, C_PAD), jnp.float32).at[:, :NUM_CLASSES] \
              .set(params["b_fc"])

    ordered = [
        h0,
        wq, wk, wv, bq, bk, bv,
        w_o, params["b_o"],
        params["ln1_g"], params["ln1_b"],
        w1, params["b1"],
        w2, params["b2"],
        params["ln2_g"], params["ln2_b"],
        w_fc, b_fc,
    ]

    def const_spec(shape):
        nd = len(shape)
        return pl.BlockSpec(tuple(shape), lambda bi, l, _nd=nd: (0,) * _nd)

    def layer_spec(shape):
        blk = (1,) + tuple(shape[1:])
        pad = (0,) * (len(shape) - 1)
        return pl.BlockSpec(blk, lambda bi, l, _pad=pad: (l,) + _pad)

    def row_spec(shape):
        blk = (1,) + tuple(shape[1:])
        pad = (0,) * (len(shape) - 1)
        return pl.BlockSpec(blk, lambda bi, l, _pad=pad: (bi,) + _pad)

    in_specs = [
        row_spec(h0.shape),
        layer_spec(wq.shape), layer_spec(wk.shape), layer_spec(wv.shape),
        layer_spec(bq.shape), layer_spec(bk.shape), layer_spec(bv.shape),
        layer_spec(w_o.shape), layer_spec(params["b_o"].shape),
        layer_spec(params["ln1_g"].shape), layer_spec(params["ln1_b"].shape),
        layer_spec(w1.shape), layer_spec(params["b1"].shape),
        layer_spec(w2.shape), layer_spec(params["b2"].shape),
        layer_spec(params["ln2_g"].shape), layer_spec(params["ln2_b"].shape),
        const_spec(w_fc.shape), const_spec(b_fc.shape),
    ]

    out = pl.pallas_call(
        _encoder_kernel,
        out_shape=jax.ShapeDtypeStruct((b, 1, C_PAD), jnp.float32),
        grid=(b, NUM_LAYERS),                 # batch outer, layers inner
        in_specs=in_specs,
        out_specs=pl.BlockSpec((1, 1, C_PAD), lambda bi, l: (bi, 0, 0)),
        scratch_shapes=[pltpu.VMEM((SEQ_LEN, EMBED_DIM), jnp.bfloat16)],
        compiler_params=pltpu.CompilerParams(
            # batch rows are independent -> shard across TCs on v7x;
            # layer axis carries the residual-stream scratch -> arbitrary.
            dimension_semantics=("parallel", "arbitrary"),
            vmem_limit_bytes=32 * 1024 * 1024),
    )(*ordered)
    return out[:, 0, :NUM_CLASSES]


def make_params(key):
    """Deterministic synthetic parameters, stored in kernel-friendly
    (already transposed, biases as 2D rows) layout (f32 masters)."""
    ks = jax.random.split(key, 12)
    s = 0.1
    E, F, L, C, D = EMBED_DIM, FFN_DIM, NUM_LAYERS, NUM_CLASSES, INPUT_DIM
    return {
        # nn.Linear(input_dim, embed_dim): weight (E, D) -> stored as (D, E)
        "w_emb": s * jax.random.normal(ks[0], (D, E), jnp.float32),
        "b_emb": s * jax.random.normal(ks[1], (1, E), jnp.float32),
        # per-layer MHA in_proj (3E, E) -> (L, E, 3E), out_proj (E, E) -> (L, E, E)
        "w_in": s * jax.random.normal(ks[2], (L, E, 3 * E), jnp.float32),
        "b_in": s * jax.random.normal(ks[3], (L, 1, 3 * E), jnp.float32),
        "w_o": s * jax.random.normal(ks[4], (L, E, E), jnp.float32),
        "b_o": s * jax.random.normal(ks[5], (L, 1, E), jnp.float32),
        # LayerNorms (PyTorch default init: gamma=1, beta=0)
        "ln1_g": jnp.ones((L, 1, E), jnp.float32),
        "ln1_b": jnp.zeros((L, 1, E), jnp.float32),
        "ln2_g": jnp.ones((L, 1, E), jnp.float32),
        "ln2_b": jnp.zeros((L, 1, E), jnp.float32),
        # FFN: linear1 (F, E) -> (L, E, F), linear2 (E, F) -> (L, F, E)
        "w1": s * jax.random.normal(ks[6], (L, E, F), jnp.float32),
        "b1": s * jax.random.normal(ks[7], (L, 1, F), jnp.float32),
        "w2": s * jax.random.normal(ks[8], (L, F, E), jnp.float32),
        "b2": s * jax.random.normal(ks[9], (L, 1, E), jnp.float32),
        # fc: (C, E) -> (E, C)
        "w_fc": s * jax.random.normal(ks[10], (E, C), jnp.float32),
        "b_fc": s * jax.random.normal(ks[11], (1, C), jnp.float32),
    }


def reference_forward(x, p):
    """Pure-JAX reference of the same math (post-norm encoder, eval mode),
    using the same bf16-quantized weights / bf16 residual-stream storage as
    the kernel so the comparison isolates kernel bugs from dtype policy."""
    scale = 1.0 / math.sqrt(HEAD_DIM)

    def q16(a):  # round-trip through bf16 (weight / residual storage)
        return a.astype(jnp.bfloat16).astype(jnp.float32)

    def one(xb):
        h = q16(xb @ p["w_emb"] + p["b_emb"][0])
        for l in range(NUM_LAYERS):
            qkv = h @ q16(p["w_in"][l]) + p["b_in"][l, 0]
            q, k, v = jnp.split(qkv, 3, axis=-1)
            outs = []
            for hh in range(NUM_HEADS):
                lo, hi = hh * HEAD_DIM, (hh + 1) * HEAD_DIM
                sc = (q[:, lo:hi] * scale) @ k[:, lo:hi].T
                pr = jax.nn.softmax(sc, axis=-1)
                outs.append(pr @ v[:, lo:hi])
            attn = jnp.concatenate(outs, -1) @ q16(p["w_o"][l]) + p["b_o"][l, 0]
            h = _layer_norm(h + attn, p["ln1_g"][l, 0], p["ln1_b"][l, 0])
            ff = jnp.maximum(h @ q16(p["w1"][l]) + p["b1"][l, 0], 0.0)
            ff = ff @ q16(p["w2"][l]) + p["b2"][l, 0]
            h = q16(_layer_norm(h + ff, p["ln2_g"][l, 0], p["ln2_b"][l, 0]))
        pooled = h.mean(axis=0)
        return pooled @ q16(p["w_fc"]) + p["b_fc"][0]

    return jax.vmap(one)(x)


if __name__ == "__main__":
    key = jax.random.PRNGKey(0)
    kx, kp = jax.random.split(key)
    x = jax.random.normal(kx, (BATCH, SEQ_LEN, INPUT_DIM), jnp.float32)
    params = make_params(kp)

    out = jax.block_until_ready(jax.jit(face_emotion_transformer)(x, params))
    ref = jax.block_until_ready(reference_forward(x, params))

    assert out.shape == (BATCH, NUM_CLASSES)
    # Tolerance covers the bf16-operand matmuls / approx softmax reciprocal in
    # the kernel vs. the f32-activation reference (weights quantized in both).
    assert jnp.allclose(out, ref, rtol=3e-2, atol=3e-2), (out, ref)

    print("KERNEL_OK")
</pallas_src>

<mosaic_0001>
module attributes {stable_mosaic.version = 11 : i64} {
  func.func @_encoder_kernel(%arg0: i32, %arg1: i32, %arg2: memref<1x8x32xbf16, #tpu.memory_space<vmem>>, %arg3: memref<1x4x32x8xbf16, #tpu.memory_space<vmem>>, %arg4: memref<1x4x32x8xbf16, #tpu.memory_space<vmem>>, %arg5: memref<1x4x32x8xbf16, #tpu.memory_space<vmem>>, %arg6: memref<1x4x1x8xf32, #tpu.memory_space<vmem>>, %arg7: memref<1x4x1x8xf32, #tpu.memory_space<vmem>>, %arg8: memref<1x4x1x8xf32, #tpu.memory_space<vmem>>, %arg9: memref<1x32x32xbf16, #tpu.memory_space<vmem>>, %arg10: memref<1x1x32xf32, #tpu.memory_space<vmem>>, %arg11: memref<1x1x32xf32, #tpu.memory_space<vmem>>, %arg12: memref<1x1x32xf32, #tpu.memory_space<vmem>>, %arg13: memref<1x32x64xbf16, #tpu.memory_space<vmem>>, %arg14: memref<1x1x64xf32, #tpu.memory_space<vmem>>, %arg15: memref<1x64x32xbf16, #tpu.memory_space<vmem>>, %arg16: memref<1x1x32xf32, #tpu.memory_space<vmem>>, %arg17: memref<1x1x32xf32, #tpu.memory_space<vmem>>, %arg18: memref<1x1x32xf32, #tpu.memory_space<vmem>>, %arg19: memref<32x128xbf16, #tpu.memory_space<vmem>>, %arg20: memref<1x128xf32, #tpu.memory_space<vmem>>, %arg21: memref<1x1x128xf32, #tpu.memory_space<vmem>>, %arg22: memref<8x32xbf16, #tpu.memory_space<vmem>>) attributes {dimension_semantics = [#tpu.dimension_semantics<parallel>, #tpu.dimension_semantics<arbitrary>], iteration_bounds = array<i64: 2, 2>, scalar_prefetch = 0 : i64, scratch_operands = 1 : i64, tpu.core_type = #tpu.core_type<tc>, window_params = [{transform_indices = @transform_0, window_bounds = array<i64: 1, 8, 32>}, {transform_indices = @transform_1, window_bounds = array<i64: 1, 4, 32, 8>}, {transform_indices = @transform_2, window_bounds = array<i64: 1, 4, 32, 8>}, {transform_indices = @transform_3, window_bounds = array<i64: 1, 4, 32, 8>}, {transform_indices = @transform_4, window_bounds = array<i64: 1, 4, 1, 8>}, {transform_indices = @transform_5, window_bounds = array<i64: 1, 4, 1, 8>}, {transform_indices = @transform_6, window_bounds = array<i64: 1, 4, 1, 8>}, {transform_indices = @transform_7, window_bounds = array<i64: 1, 32, 32>}, {transform_indices = @transform_8, window_bounds = array<i64: 1, 1, 32>}, {transform_indices = @transform_9, window_bounds = array<i64: 1, 1, 32>}, {transform_indices = @transform_10, window_bounds = array<i64: 1, 1, 32>}, {transform_indices = @transform_11, window_bounds = array<i64: 1, 32, 64>}, {transform_indices = @transform_12, window_bounds = array<i64: 1, 1, 64>}, {transform_indices = @transform_13, window_bounds = array<i64: 1, 64, 32>}, {transform_indices = @transform_14, window_bounds = array<i64: 1, 1, 32>}, {transform_indices = @transform_15, window_bounds = array<i64: 1, 1, 32>}, {transform_indices = @transform_16, window_bounds = array<i64: 1, 1, 32>}, {pipeline_mode = #tpu.pipeline_mode<synchronous>, transform_indices = @transform_17, window_bounds = array<i64: 32, 128>}, {pipeline_mode = #tpu.pipeline_mode<synchronous>, transform_indices = @transform_18, window_bounds = array<i64: 1, 128>}, {transform_indices = @transform_19, window_bounds = array<i64: 1, 1, 128>}]} {
    %c0_i32 = arith.constant 0 : i32
    %0 = arith.cmpi eq, %arg1, %c0_i32 : i32
    %1 = arith.extui %0 : i1 to i32
    %c0_i32_0 = arith.constant 0 : i32
    %2 = arith.cmpi ne, %1, %c0_i32_0 : i32
    scf.if %2 {
      %c0_169 = arith.constant 0 : index
      %c0_170 = arith.constant 0 : index
      %c0_171 = arith.constant 0 : index
      %239 = vector.load %arg2[%c0_169, %c0_170, %c0_171] : memref<1x8x32xbf16, #tpu.memory_space<vmem>>, vector<1x8x32xbf16>
      %240 = vector.shape_cast %239 : vector<1x8x32xbf16> to vector<8x32xbf16>
      %c0_172 = arith.constant 0 : index
      %c0_173 = arith.constant 0 : index
      %241 = vector.load %arg22[%c0_172, %c0_173] : memref<8x32xbf16, #tpu.memory_space<vmem>>, vector<8x32xbf16>
      tpu.vector_store %arg22[%c0_172, %c0_173], %240 {strides = array<i32>} : memref<8x32xbf16, #tpu.memory_space<vmem>>, vector<8x32xbf16>,
    } else {
    }
    %c0 = arith.constant 0 : index
    %c0_1 = arith.constant 0 : index
    %3 = vector.load %arg22[%c0, %c0_1] : memref<8x32xbf16, #tpu.memory_space<vmem>>, vector<8x32xbf16>
    %4 = arith.extf %3 : vector<8x32xbf16> to vector<8x32xf32>
    %c0_2 = arith.constant 0 : index
    %c0_3 = arith.constant 0 : index
    %c0_4 = arith.constant 0 : index
    %c0_5 = arith.constant 0 : index
    %5 = vector.load %arg3[%c0_2, %c0_3, %c0_4, %c0_5] : memref<1x4x32x8xbf16, #tpu.memory_space<vmem>>, vector<1x1x32x8xbf16>
    %6 = vector.shape_cast %5 : vector<1x1x32x8xbf16> to vector<32x8xbf16>
    %cst = arith.constant dense<0.000000e+00> : vector<8x8xf32>
    %7 = tpu.matmul %3, %6, %cst {dimension_numbers = #tpu.dot_dimension_numbers<[1], [0], [0], [1], [0, 0, 1, 1], [], []>} : vector<8x32xbf16>, vector<32x8xbf16>, vector<8x8xf32> -> vector<8x8xf32>
    %c0_6 = arith.constant 0 : index
    %c0_7 = arith.constant 0 : index
    %c0_8 = arith.constant 0 : index
    %c0_9 = arith.constant 0 : index
    %8 = vector.load %arg6[%c0_6, %c0_7, %c0_8, %c0_9] : memref<1x4x1x8xf32, #tpu.memory_space<vmem>>, vector<1x1x1x8xf32>
    %9 = vector.shape_cast %8 : vector<1x1x1x8xf32> to vector<1x8xf32>
    %10 = vector.broadcast %9 : vector<1x8xf32> to vector<8x8xf32>
    %11 = arith.addf %7, %10 : vector<8x8xf32>
    %c0_10 = arith.constant 0 : index
    %c0_11 = arith.constant 0 : index
    %c0_12 = arith.constant 0 : index
    %c0_13 = arith.constant 0 : index
    %12 = vector.load %arg4[%c0_10, %c0_11, %c0_12, %c0_13] : memref<1x4x32x8xbf16, #tpu.memory_space<vmem>>, vector<1x1x32x8xbf16>
    %13 = vector.shape_cast %12 : vector<1x1x32x8xbf16> to vector<32x8xbf16>
    %cst_14 = arith.constant dense<0.000000e+00> : vector<8x8xf32>
    %14 = tpu.matmul %3, %13, %cst_14 {dimension_numbers = #tpu.dot_dimension_numbers<[1], [0], [0], [1], [0, 0, 1, 1], [], []>} : vector<8x32xbf16>, vector<32x8xbf16>, vector<8x8xf32> -> vector<8x8xf32>
    %c0_15 = arith.constant 0 : index
    %c0_16 = arith.constant 0 : index
    %c0_17 = arith.constant 0 : index
    %c0_18 = arith.constant 0 : index
    %15 = vector.load %arg7[%c0_15, %c0_16, %c0_17, %c0_18] : memref<1x4x1x8xf32, #tpu.memory_space<vmem>>, vector<1x1x1x8xf32>
    %16 = vector.shape_cast %15 : vector<1x1x1x8xf32> to vector<1x8xf32>
    %17 = vector.broadcast %16 : vector<1x8xf32> to vector<8x8xf32>
    %18 = arith.addf %14, %17 : vector<8x8xf32>
    %c0_19 = arith.constant 0 : index
    %c0_20 = arith.constant 0 : index
    %c0_21 = arith.constant 0 : index
    %c0_22 = arith.constant 0 : index
    %19 = vector.load %arg5[%c0_19, %c0_20, %c0_21, %c0_22] : memref<1x4x32x8xbf16, #tpu.memory_space<vmem>>, vector<1x1x32x8xbf16>
    %20 = vector.shape_cast %19 : vector<1x1x32x8xbf16> to vector<32x8xbf16>
    %cst_23 = arith.constant dense<0.000000e+00> : vector<8x8xf32>
    %21 = tpu.matmul %3, %20, %cst_23 {dimension_numbers = #tpu.dot_dimension_numbers<[1], [0], [0], [1], [0, 0, 1, 1], [], []>} : vector<8x32xbf16>, vector<32x8xbf16>, vector<8x8xf32> -> vector<8x8xf32>
    %c0_24 = arith.constant 0 : index
    %c0_25 = arith.constant 0 : index
    %c0_26 = arith.constant 0 : index
    %c0_27 = arith.constant 0 : index
    %22 = vector.load %arg8[%c0_24, %c0_25, %c0_26, %c0_27] : memref<1x4x1x8xf32, #tpu.memory_space<vmem>>, vector<1x1x1x8xf32>
    %23 = vector.shape_cast %22 : vector<1x1x1x8xf32> to vector<1x8xf32>
    %24 = vector.broadcast %23 : vector<1x8xf32> to vector<8x8xf32>
    %25 = arith.addf %21, %24 : vector<8x8xf32>
    %26 = arith.truncf %11 : vector<8x8xf32> to vector<8x8xbf16>
    %27 = arith.truncf %18 : vector<8x8xf32> to vector<8x8xbf16>
    %cst_28 = arith.constant dense<0.000000e+00> : vector<8x8xf32>
    %28 = tpu.matmul %26, %27, %cst_28 {dimension_numbers = #tpu.dot_dimension_numbers<[1], [1], [0], [0], [0, 0, 1, 0], [], []>} : vector<8x8xbf16>, vector<8x8xbf16>, vector<8x8xf32> -> vector<8x8xf32>
    %cst_29 = arith.constant dense<0xFF800000> : vector<8xf32>
    %29 = vector.multi_reduction <maximumf>, %28, %cst_29 [1] : vector<8x8xf32> to vector<8xf32>
    %30 = vector.shape_cast %29 : vector<8xf32> to vector<8x1xf32>
    %31 = vector.broadcast %30 : vector<8x1xf32> to vector<8x8xf32>
    %32 = arith.subf %28, %31 : vector<8x8xf32>
    %33 = math.exp %32 : vector<8x8xf32>
    %cst_30 = arith.constant dense<0.000000e+00> : vector<8xf32>
    %34 = vector.multi_reduction <add>, %33, %cst_30 [1] : vector<8x8xf32> to vector<8xf32>
    %35 = vector.shape_cast %34 : vector<8xf32> to vector<8x1xf32>
    %36 = tpu.reciprocal %35 {approx = true} : vector<8x1xf32> -> vector<8x1xf32>
    %37 = vector.broadcast %36 : vector<8x1xf32> to vector<8x8xf32>
    %38 = arith.mulf %33, %37 : vector<8x8xf32>
    %39 = arith.truncf %38 : vector<8x8xf32> to vector<8x8xbf16>
    %40 = arith.truncf %25 : vector<8x8xf32> to vector<8x8xbf16>
    %cst_31 = arith.constant dense<0.000000e+00> : vector<8x8xf32>
    %41 = tpu.matmul %39, %40, %cst_31 {dimension_numbers = #tpu.dot_dimension_numbers<[1], [0], [0], [1], [0, 0, 1, 1], [], []>} : vector<8x8xbf16>, vector<8x8xbf16>, vector<8x8xf32> -> vector<8x8xf32>
    %c0_32 = arith.constant 0 : index
    %c1 = arith.constant 1 : index
    %c0_33 = arith.constant 0 : index
    %c0_34 = arith.constant 0 : index
    %42 = vector.load %arg3[%c0_32, %c1, %c0_33, %c0_34] : memref<1x4x32x8xbf16, #tpu.memory_space<vmem>>, vector<1x1x32x8xbf16>
    %43 = vector.shape_cast %42 : vector<1x1x32x8xbf16> to vector<32x8xbf16>
    %cst_35 = arith.constant dense<0.000000e+00> : vector<8x8xf32>
    %44 = tpu.matmul %3, %43, %cst_35 {dimension_numbers = #tpu.dot_dimension_numbers<[1], [0], [0], [1], [0, 0, 1, 1], [], []>} : vector<8x32xbf16>, vector<32x8xbf16>, vector<8x8xf32> -> vector<8x8xf32>
    %c0_36 = arith.constant 0 : index
    %c1_37 = arith.constant 1 : index
    %c0_38 = arith.constant 0 : index
    %c0_39 = arith.constant 0 : index
    %45 = vector.load %arg6[%c0_36, %c1_37, %c0_38, %c0_39] : memref<1x4x1x8xf32, #tpu.memory_space<vmem>>, vector<1x1x1x8xf32>
    %46 = vector.shape_cast %45 : vector<1x1x1x8xf32> to vector<1x8xf32>
    %47 = vector.broadcast %46 : vector<1x8xf32> to vector<8x8xf32>
    %48 = arith.addf %44, %47 : vector<8x8xf32>
    %c0_40 = arith.constant 0 : index
    %c1_41 = arith.constant 1 : index
    %c0_42 = arith.constant 0 : index
    %c0_43 = arith.constant 0 : index
    %49 = vector.load %arg4[%c0_40, %c1_41, %c0_42, %c0_43] : memref<1x4x32x8xbf16, #tpu.memory_space<vmem>>, vector<1x1x32x8xbf16>
    %50 = vector.shape_cast %49 : vector<1x1x32x8xbf16> to vector<32x8xbf16>
    %cst_44 = arith.constant dense<0.000000e+00> : vector<8x8xf32>
    %51 = tpu.matmul %3, %50, %cst_44 {dimension_numbers = #tpu.dot_dimension_numbers<[1], [0], [0], [1], [0, 0, 1, 1], [], []>} : vector<8x32xbf16>, vector<32x8xbf16>, vector<8x8xf32> -> vector<8x8xf32>
    %c0_45 = arith.constant 0 : index
    %c1_46 = arith.constant 1 : index
    %c0_47 = arith.constant 0 : index
    %c0_48 = arith.constant 0 : index
    %52 = vector.load %arg7[%c0_45, %c1_46, %c0_47, %c0_48] : memref<1x4x1x8xf32, #tpu.memory_space<vmem>>, vector<1x1x1x8xf32>
    %53 = vector.shape_cast %52 : vector<1x1x1x8xf32> to vector<1x8xf32>
    %54 = vector.broadcast %53 : vector<1x8xf32> to vector<8x8xf32>
    %55 = arith.addf %51, %54 : vector<8x8xf32>
    %c0_49 = arith.constant 0 : index
    %c1_50 = arith.constant 1 : index
    %c0_51 = arith.constant 0 : index
    %c0_52 = arith.constant 0 : index
    %56 = vector.load %arg5[%c0_49, %c1_50, %c0_51, %c0_52] : memref<1x4x32x8xbf16, #tpu.memory_space<vmem>>, vector<1x1x32x8xbf16>
    %57 = vector.shape_cast %56 : vector<1x1x32x8xbf16> to vector<32x8xbf16>
    %cst_53 = arith.constant dense<0.000000e+00> : vector<8x8xf32>
    %58 = tpu.matmul %3, %57, %cst_53 {dimension_numbers = #tpu.dot_dimension_numbers<[1], [0], [0], [1], [0, 0, 1, 1], [], []>} : vector<8x32xbf16>, vector<32x8xbf16>, vector<8x8xf32> -> vector<8x8xf32>
    %c0_54 = arith.constant 0 : index
    %c1_55 = arith.constant 1 : index
    %c0_56 = arith.constant 0 : index
    %c0_57 = arith.constant 0 : index
    %59 = vector.load %arg8[%c0_54, %c1_55, %c0_56, %c0_57] : memref<1x4x1x8xf32, #tpu.memory_space<vmem>>, vector<1x1x1x8xf32>
    %60 = vector.shape_cast %59 : vector<1x1x1x8xf32> to vector<1x8xf32>
    %61 = vector.broadcast %60 : vector<1x8xf32> to vector<8x8xf32>
    %62 = arith.addf %58, %61 : vector<8x8xf32>
    %63 = arith.truncf %48 : vector<8x8xf32> to vector<8x8xbf16>
    %64 = arith.truncf %55 : vector<8x8xf32> to vector<8x8xbf16>
    %cst_58 = arith.constant dense<0.000000e+00> : vector<8x8xf32>
    %65 = tpu.matmul %63, %64, %cst_58 {dimension_numbers = #tpu.dot_dimension_numbers<[1], [1], [0], [0], [0, 0, 1, 0], [], []>} : vector<8x8xbf16>, vector<8x8xbf16>, vector<8x8xf32> -> vector<8x8xf32>
    %cst_59 = arith.constant dense<0xFF800000> : vector<8xf32>
    %66 = vector.multi_reduction <maximumf>, %65, %cst_59 [1] : vector<8x8xf32> to vector<8xf32>
    %67 = vector.shape_cast %66 : vector<8xf32> to vector<8x1xf32>
    %68 = vector.broadcast %67 : vector<8x1xf32> to vector<8x8xf32>
    %69 = arith.subf %65, %68 : vector<8x8xf32>
    %70 = math.exp %69 : vector<8x8xf32>
    %cst_60 = arith.constant dense<0.000000e+00> : vector<8xf32>
    %71 = vector.multi_reduction <add>, %70, %cst_60 [1] : vector<8x8xf32> to vector<8xf32>
    %72 = vector.shape_cast %71 : vector<8xf32> to vector<8x1xf32>
    %73 = tpu.reciprocal %72 {approx = true} : vector<8x1xf32> -> vector<8x1xf32>
    %74 = vector.broadcast %73 : vector<8x1xf32> to vector<8x8xf32>
    %75 = arith.mulf %70, %74 : vector<8x8xf32>
    %76 = arith.truncf %75 : vector<8x8xf32> to vector<8x8xbf16>
    %77 = arith.truncf %62 : vector<8x8xf32> to vector<8x8xbf16>
    %cst_61 = arith.constant dense<0.000000e+00> : vector<8x8xf32>
    %78 = tpu.matmul %76, %77, %cst_61 {dimension_numbers = #tpu.dot_dimension_numbers<[1], [0], [0], [1], [0, 0, 1, 1], [], []>} : vector<8x8xbf16>, vector<8x8xbf16>, vector<8x8xf32> -> vector<8x8xf32>
    %c0_62 = arith.constant 0 : index
    %c2 = arith.constant 2 : index
    %c0_63 = arith.constant 0 : index
    %c0_64 = arith.constant 0 : index
    %79 = vector.load %arg3[%c0_62, %c2, %c0_63, %c0_64] : memref<1x4x32x8xbf16, #tpu.memory_space<vmem>>, vector<1x1x32x8xbf16>
    %80 = vector.shape_cast %79 : vector<1x1x32x8xbf16> to vector<32x8xbf16>
    %cst_65 = arith.constant dense<0.000000e+00> : vector<8x8xf32>
    %81 = tpu.matmul %3, %80, %cst_65 {dimension_numbers = #tpu.dot_dimension_numbers<[1], [0], [0], [1], [0, 0, 1, 1], [], []>} : vector<8x32xbf16>, vector<32x8xbf16>, vector<8x8xf32> -> vector<8x8xf32>
    %c0_66 = arith.constant 0 : index
    %c2_67 = arith.constant 2 : index
    %c0_68 = arith.constant 0 : index
    %c0_69 = arith.constant 0 : index
    %82 = vector.load %arg6[%c0_66, %c2_67, %c0_68, %c0_69] : memref<1x4x1x8xf32, #tpu.memory_space<vmem>>, vector<1x1x1x8xf32>
    %83 = vector.shape_cast %82 : vector<1x1x1x8xf32> to vector<1x8xf32>
    %84 = vector.broadcast %83 : vector<1x8xf32> to vector<8x8xf32>
    %85 = arith.addf %81, %84 : vector<8x8xf32>
    %c0_70 = arith.constant 0 : index
    %c2_71 = arith.constant 2 : index
    %c0_72 = arith.constant 0 : index
    %c0_73 = arith.constant 0 : index
    %86 = vector.load %arg4[%c0_70, %c2_71, %c0_72, %c0_73] : memref<1x4x32x8xbf16, #tpu.memory_space<vmem>>, vector<1x1x32x8xbf16>
    %87 = vector.shape_cast %86 : vector<1x1x32x8xbf16> to vector<32x8xbf16>
    %cst_74 = arith.constant dense<0.000000e+00> : vector<8x8xf32>
    %88 = tpu.matmul %3, %87, %cst_74 {dimension_numbers = #tpu.dot_dimension_numbers<[1], [0], [0], [1], [0, 0, 1, 1], [], []>} : vector<8x32xbf16>, vector<32x8xbf16>, vector<8x8xf32> -> vector<8x8xf32>
    %c0_75 = arith.constant 0 : index
    %c2_76 = arith.constant 2 : index
    %c0_77 = arith.constant 0 : index
    %c0_78 = arith.constant 0 : index
    %89 = vector.load %arg7[%c0_75, %c2_76, %c0_77, %c0_78] : memref<1x4x1x8xf32, #tpu.memory_space<vmem>>, vector<1x1x1x8xf32>
    %90 = vector.shape_cast %89 : vector<1x1x1x8xf32> to vector<1x8xf32>
    %91 = vector.broadcast %90 : vector<1x8xf32> to vector<8x8xf32>
    %92 = arith.addf %88, %91 : vector<8x8xf32>
    %c0_79 = arith.constant 0 : index
    %c2_80 = arith.constant 2 : index
    %c0_81 = arith.constant 0 : index
    %c0_82 = arith.constant 0 : index
    %93 = vector.load %arg5[%c0_79, %c2_80, %c0_81, %c0_82] : memref<1x4x32x8xbf16, #tpu.memory_space<vmem>>, vector<1x1x32x8xbf16>
    %94 = vector.shape_cast %93 : vector<1x1x32x8xbf16> to vector<32x8xbf16>
    %cst_83 = arith.constant dense<0.000000e+00> : vector<8x8xf32>
    %95 = tpu.matmul %3, %94, %cst_83 {dimension_numbers = #tpu.dot_dimension_numbers<[1], [0], [0], [1], [0, 0, 1, 1], [], []>} : vector<8x32xbf16>, vector<32x8xbf16>, vector<8x8xf32> -> vector<8x8xf32>
    %c0_84 = arith.constant 0 : index
    %c2_85 = arith.constant 2 : index
    %c0_86 = arith.constant 0 : index
    %c0_87 = arith.constant 0 : index
    %96 = vector.load %arg8[%c0_84, %c2_85, %c0_86, %c0_87] : memref<1x4x1x8xf32, #tpu.memory_space<vmem>>, vector<1x1x1x8xf32>
    %97 = vector.shape_cast %96 : vector<1x1x1x8xf32> to vector<1x8xf32>
    %98 = vector.broadcast %97 : vector<1x8xf32> to vector<8x8xf32>
    %99 = arith.addf %95, %98 : vector<8x8xf32>
    %100 = arith.truncf %85 : vector<8x8xf32> to vector<8x8xbf16>
    %101 = arith.truncf %92 : vector<8x8xf32> to vector<8x8xbf16>
    %cst_88 = arith.constant dense<0.000000e+00> : vector<8x8xf32>
    %102 = tpu.matmul %100, %101, %cst_88 {dimension_numbers = #tpu.dot_dimension_numbers<[1], [1], [0], [0], [0, 0, 1, 0], [], []>} : vector<8x8xbf16>, vector<8x8xbf16>, vector<8x8xf32> -> vector<8x8xf32>
    %cst_89 = arith.constant dense<0xFF800000> : vector<8xf32>
    %103 = vector.multi_reduction <maximumf>, %102, %cst_89 [1] : vector<8x8xf32> to vector<8xf32>
    %104 = vector.shape_cast %103 : vector<8xf32> to vector<8x1xf32>
    %105 = vector.broadcast %104 : vector<8x1xf32> to vector<8x8xf32>
    %106 = arith.subf %102, %105 : vector<8x8xf32>
    %107 = math.exp %106 : vector<8x8xf32>
    %cst_90 = arith.constant dense<0.000000e+00> : vector<8xf32>
    %108 = vector.multi_reduction <add>, %107, %cst_90 [1] : vector<8x8xf32> to vector<8xf32>
    %109 = vector.shape_cast %108 : vector<8xf32> to vector<8x1xf32>
    %110 = tpu.reciprocal %109 {approx = true} : vector<8x1xf32> -> vector<8x1xf32>
    %111 = vector.broadcast %110 : vector<8x1xf32> to vector<8x8xf32>
    %112 = arith.mulf %107, %111 : vector<8x8xf32>
    %113 = arith.truncf %112 : vector<8x8xf32> to vector<8x8xbf16>
    %114 = arith.truncf %99 : vector<8x8xf32> to vector<8x8xbf16>
    %cst_91 = arith.constant dense<0.000000e+00> : vector<8x8xf32>
    %115 = tpu.matmul %113, %114, %cst_91 {dimension_numbers = #tpu.dot_dimension_numbers<[1], [0], [0], [1], [0, 0, 1, 1], [], []>} : vector<8x8xbf16>, vector<8x8xbf16>, vector<8x8xf32> -> vector<8x8xf32>
    %c0_92 = arith.constant 0 : index
    %c3 = arith.constant 3 : index
    %c0_93 = arith.constant 0 : index
    %c0_94 = arith.constant 0 : index
    %116 = vector.load %arg3[%c0_92, %c3, %c0_93, %c0_94] : memref<1x4x32x8xbf16, #tpu.memory_space<vmem>>, vector<1x1x32x8xbf16>
    %117 = vector.shape_cast %116 : vector<1x1x32x8xbf16> to vector<32x8xbf16>
    %cst_95 = arith.constant dense<0.000000e+00> : vector<8x8xf32>
    %118 = tpu.matmul %3, %117, %cst_95 {dimension_numbers = #tpu.dot_dimension_numbers<[1], [0], [0], [1], [0, 0, 1, 1], [], []>} : vector<8x32xbf16>, vector<32x8xbf16>, vector<8x8xf32> -> vector<8x8xf32>
    %c0_96 = arith.constant 0 : index
    %c3_97 = arith.constant 3 : index
    %c0_98 = arith.constant 0 : index
    %c0_99 = arith.constant 0 : index
    %119 = vector.load %arg6[%c0_96, %c3_97, %c0_98, %c0_99] : memref<1x4x1x8xf32, #tpu.memory_space<vmem>>, vector<1x1x1x8xf32>
    %120 = vector.shape_cast %119 : vector<1x1x1x8xf32> to vector<1x8xf32>
    %121 = vector.broadcast %120 : vector<1x8xf32> to vector<8x8xf32>
    %122 = arith.addf %118, %121 : vector<8x8xf32>
    %c0_100 = arith.constant 0 : index
    %c3_101 = arith.constant 3 : index
    %c0_102 = arith.constant 0 : index
    %c0_103 = arith.constant 0 : index
    %123 = vector.load %arg4[%c0_100, %c3_101, %c0_102, %c0_103] : memref<1x4x32x8xbf16, #tpu.memory_space<vmem>>, vector<1x1x32x8xbf16>
    %124 = vector.shape_cast %123 : vector<1x1x32x8xbf16> to vector<32x8xbf16>
    %cst_104 = arith.constant dense<0.000000e+00> : vector<8x8xf32>
    %125 = tpu.matmul %3, %124, %cst_104 {dimension_numbers = #tpu.dot_dimension_numbers<[1], [0], [0], [1], [0, 0, 1, 1], [], []>} : vector<8x32xbf16>, vector<32x8xbf16>, vector<8x8xf32> -> vector<8x8xf32>
    %c0_105 = arith.constant 0 : index
    %c3_106 = arith.constant 3 : index
    %c0_107 = arith.constant 0 : index
    %c0_108 = arith.constant 0 : index
    %126 = vector.load %arg7[%c0_105, %c3_106, %c0_107, %c0_108] : memref<1x4x1x8xf32, #tpu.memory_space<vmem>>, vector<1x1x1x8xf32>
    %127 = vector.shape_cast %126 : vector<1x1x1x8xf32> to vector<1x8xf32>
    %128 = vector.broadcast %127 : vector<1x8xf32> to vector<8x8xf32>
    %129 = arith.addf %125, %128 : vector<8x8xf32>
    %c0_109 = arith.constant 0 : index
    %c3_110 = arith.constant 3 : index
    %c0_111 = arith.constant 0 : index
    %c0_112 = arith.constant 0 : index
    %130 = vector.load %arg5[%c0_109, %c3_110, %c0_111, %c0_112] : memref<1x4x32x8xbf16, #tpu.memory_space<vmem>>, vector<1x1x32x8xbf16>
    %131 = vector.shape_cast %130 : vector<1x1x32x8xbf16> to vector<32x8xbf16>
    %cst_113 = arith.constant dense<0.000000e+00> : vector<8x8xf32>
    %132 = tpu.matmul %3, %131, %cst_113 {dimension_numbers = #tpu.dot_dimension_numbers<[1], [0], [0], [1], [0, 0, 1, 1], [], []>} : vector<8x32xbf16>, vector<32x8xbf16>, vector<8x8xf32> -> vector<8x8xf32>
    %c0_114 = arith.constant 0 : index
    %c3_115 = arith.constant 3 : index
    %c0_116 = arith.constant 0 : index
    %c0_117 = arith.constant 0 : index
    %133 = vector.load %arg8[%c0_114, %c3_115, %c0_116, %c0_117] : memref<1x4x1x8xf32, #tpu.memory_space<vmem>>, vector<1x1x1x8xf32>
    %134 = vector.shape_cast %133 : vector<1x1x1x8xf32> to vector<1x8xf32>
    %135 = vector.broadcast %134 : vector<1x8xf32> to vector<8x8xf32>
    %136 = arith.addf %132, %135 : vector<8x8xf32>
    %137 = arith.truncf %122 : vector<8x8xf32> to vector<8x8xbf16>
    %138 = arith.truncf %129 : vector<8x8xf32> to vector<8x8xbf16>
    %cst_118 = arith.constant dense<0.000000e+00> : vector<8x8xf32>
    %139 = tpu.matmul %137, %138, %cst_118 {dimension_numbers = #tpu.dot_dimension_numbers<[1], [1], [0], [0], [0, 0, 1, 0], [], []>} : vector<8x8xbf16>, vector<8x8xbf16>, vector<8x8xf32> -> vector<8x8xf32>
    %cst_119 = arith.constant dense<0xFF800000> : vector<8xf32>
    %140 = vector.multi_reduction <maximumf>, %139, %cst_119 [1] : vector<8x8xf32> to vector<8xf32>
    %141 = vector.shape_cast %140 : vector<8xf32> to vector<8x1xf32>
    %142 = vector.broadcast %141 : vector<8x1xf32> to vector<8x8xf32>
    %143 = arith.subf %139, %142 : vector<8x8xf32>
    %144 = math.exp %143 : vector<8x8xf32>
    %cst_120 = arith.constant dense<0.000000e+00> : vector<8xf32>
    %145 = vector.multi_reduction <add>, %144, %cst_120 [1] : vector<8x8xf32> to vector<8xf32>
    %146 = vector.shape_cast %145 : vector<8xf32> to vector<8x1xf32>
    %147 = tpu.reciprocal %146 {approx = true} : vector<8x1xf32> -> vector<8x1xf32>
    %148 = vector.broadcast %147 : vector<8x1xf32> to vector<8x8xf32>
    %149 = arith.mulf %144, %148 : vector<8x8xf32>
    %150 = arith.truncf %149 : vector<8x8xf32> to vector<8x8xbf16>
    %151 = arith.truncf %136 : vector<8x8xf32> to vector<8x8xbf16>
    %cst_121 = arith.constant dense<0.000000e+00> : vector<8x8xf32>
    %152 = tpu.matmul %150, %151, %cst_121 {dimension_numbers = #tpu.dot_dimension_numbers<[1], [0], [0], [1], [0, 0, 1, 1], [], []>} : vector<8x8xbf16>, vector<8x8xbf16>, vector<8x8xf32> -> vector<8x8xf32>
    %153 = tpu.concatenate %41, %78, %115, %152 in 1 : vector<8x8xf32>, vector<8x8xf32>, vector<8x8xf32>, vector<8x8xf32> -> vector<8x32xf32>
    %154 = arith.truncf %153 : vector<8x32xf32> to vector<8x32xbf16>
    %c0_122 = arith.constant 0 : index
    %c0_123 = arith.constant 0 : index
    %c0_124 = arith.constant 0 : index
    %155 = vector.load %arg9[%c0_122, %c0_123, %c0_124] : memref<1x32x32xbf16, #tpu.memory_space<vmem>>, vector<1x32x32xbf16>
    %156 = vector.shape_cast %155 : vector<1x32x32xbf16> to vector<32x32xbf16>
    %cst_125 = arith.constant dense<0.000000e+00> : vector<8x32xf32>
    %157 = tpu.matmul %154, %156, %cst_125 {dimension_numbers = #tpu.dot_dimension_numbers<[1], [0], [0], [1], [0, 0, 1, 1], [], []>} : vector<8x32xbf16>, vector<32x32xbf16>, vector<8x32xf32> -> vector<8x32xf32>
    %c0_126 = arith.constant 0 : index
    %c0_127 = arith.constant 0 : index
    %c0_128 = arith.constant 0 : index
    %158 = vector.load %arg10[%c0_126, %c0_127, %c0_128] : memref<1x1x32xf32, #tpu.memory_space<vmem>>, vector<1x1x32xf32>
    %159 = vector.shape_cast %158 : vector<1x1x32xf32> to vector<1x32xf32>
    %160 = vector.broadcast %159 : vector<1x32xf32> to vector<8x32xf32>
    %161 = arith.addf %157, %160 : vector<8x32xf32>
    %162 = arith.addf %4, %161 : vector<8x32xf32>
    %c0_129 = arith.constant 0 : index
    %c0_130 = arith.constant 0 : index
    %c0_131 = arith.constant 0 : index
    %163 = vector.load %arg11[%c0_129, %c0_130, %c0_131] : memref<1x1x32xf32, #tpu.memory_space<vmem>>, vector<1x1x32xf32>
    %164 = vector.shape_cast %163 : vector<1x1x32xf32> to vector<1x32xf32>
    %c0_132 = arith.constant 0 : index
    %c0_133 = arith.constant 0 : index
    %c0_134 = arith.constant 0 : index
    %165 = vector.load %arg12[%c0_132, %c0_133, %c0_134] : memref<1x1x32xf32, #tpu.memory_space<vmem>>, vector<1x1x32xf32>
    %166 = vector.shape_cast %165 : vector<1x1x32xf32> to vector<1x32xf32>
    %cst_135 = arith.constant dense<0.000000e+00> : vector<8xf32>
    %167 = vector.multi_reduction <add>, %162, %cst_135 [1] : vector<8x32xf32> to vector<8xf32>
    %168 = vector.shape_cast %167 : vector<8xf32> to vector<8x1xf32>
    %cst_136 = arith.constant 3.200000e+01 : f32
    %169 = vector.broadcast %cst_136 : f32 to vector<8x1xf32>
    %170 = arith.divf %168, %169 : vector<8x1xf32>
    %171 = vector.broadcast %170 : vector<8x1xf32> to vector<8x32xf32>
    %172 = arith.subf %162, %171 : vector<8x32xf32>
    %173 = arith.mulf %172, %172 : vector<8x32xf32>
    %cst_137 = arith.constant dense<0.000000e+00> : vector<8xf32>
    %174 = vector.multi_reduction <add>, %173, %cst_137 [1] : vector<8x32xf32> to vector<8xf32>
    %175 = vector.shape_cast %174 : vector<8xf32> to vector<8x1xf32>
    %cst_138 = arith.constant 3.200000e+01 : f32
    %176 = vector.broadcast %cst_138 : f32 to vector<8x1xf32>
    %177 = arith.divf %175, %176 : vector<8x1xf32>
    %178 = vector.broadcast %170 : vector<8x1xf32> to vector<8x32xf32>
    %179 = arith.subf %162, %178 : vector<8x32xf32>
    %cst_139 = arith.constant 9.99999974E-6 : f32
    %180 = vector.broadcast %cst_139 : f32 to vector<8x1xf32>
    %181 = arith.addf %177, %180 : vector<8x1xf32>
    %182 = math.rsqrt %181 : vector<8x1xf32>
    %183 = vector.broadcast %182 : vector<8x1xf32> to vector<8x32xf32>
    %184 = arith.mulf %179, %183 : vector<8x32xf32>
    %185 = vector.broadcast %164 : vector<1x32xf32> to vector<8x32xf32>
    %186 = arith.mulf %184, %185 : vector<8x32xf32>
    %187 = vector.broadcast %166 : vector<1x32xf32> to vector<8x32xf32>
    %188 = arith.addf %186, %187 : vector<8x32xf32>
    %189 = arith.truncf %188 : vector<8x32xf32> to vector<8x32xbf16>
    %c0_140 = arith.constant 0 : index
    %c0_141 = arith.constant 0 : index
    %c0_142 = arith.constant 0 : index
    %190 = vector.load %arg13[%c0_140, %c0_141, %c0_142] : memref<1x32x64xbf16, #tpu.memory_space<vmem>>, vector<1x32x64xbf16>
    %191 = vector.shape_cast %190 : vector<1x32x64xbf16> to vector<32x64xbf16>
    %cst_143 = arith.constant dense<0.000000e+00> : vector<8x64xf32>
    %192 = tpu.matmul %189, %191, %cst_143 {dimension_numbers = #tpu.dot_dimension_numbers<[1], [0], [0], [1], [0, 0, 1, 1], [], []>} : vector<8x32xbf16>, vector<32x64xbf16>, vector<8x64xf32> -> vector<8x64xf32>
    %c0_144 = arith.constant 0 : index
    %c0_145 = arith.constant 0 : index
    %c0_146 = arith.constant 0 : index
    %193 = vector.load %arg14[%c0_144, %c0_145, %c0_146] : memref<1x1x64xf32, #tpu.memory_space<vmem>>, vector<1x1x64xf32>
    %194 = vector.shape_cast %193 : vector<1x1x64xf32> to vector<1x64xf32>
    %195 = vector.broadcast %194 : vector<1x64xf32> to vector<8x64xf32>
    %196 = arith.addf %192, %195 : vector<8x64xf32>
    %cst_147 = arith.constant 0.000000e+00 : f32
    %197 = vector.broadcast %cst_147 : f32 to vector<8x64xf32>
    %198 = arith.maximumf %196, %197 : vector<8x64xf32>
    %199 = arith.truncf %198 : vector<8x64xf32> to vector<8x64xbf16>
    %c0_148 = arith.constant 0 : index
    %c0_149 = arith.constant 0 : index
    %c0_150 = arith.constant 0 : index
    %200 = vector.load %arg15[%c0_148, %c0_149, %c0_150] : memref<1x64x32xbf16, #tpu.memory_space<vmem>>, vector<1x64x32xbf16>
    %201 = vector.shape_cast %200 : vector<1x64x32xbf16> to vector<64x32xbf16>
    %cst_151 = arith.constant dense<0.000000e+00> : vector<8x32xf32>
    %202 = tpu.matmul %199, %201, %cst_151 {dimension_numbers = #tpu.dot_dimension_numbers<[1], [0], [0], [1], [0, 0, 1, 1], [], []>} : vector<8x64xbf16>, vector<64x32xbf16>, vector<8x32xf32> -> vector<8x32xf32>
    %c0_152 = arith.constant 0 : index
    %c0_153 = arith.constant 0 : index
    %c0_154 = arith.constant 0 : index
    %203 = vector.load %arg16[%c0_152, %c0_153, %c0_154] : memref<1x1x32xf32, #tpu.memory_space<vmem>>, vector<1x1x32xf32>
    %204 = vector.shape_cast %203 : vector<1x1x32xf32> to vector<1x32xf32>
    %205 = vector.broadcast %204 : vector<1x32xf32> to vector<8x32xf32>
    %206 = arith.addf %202, %205 : vector<8x32xf32>
    %207 = arith.addf %188, %206 : vector<8x32xf32>
    %c0_155 = arith.constant 0 : index
    %c0_156 = arith.constant 0 : index
    %c0_157 = arith.constant 0 : index
    %208 = vector.load %arg17[%c0_155, %c0_156, %c0_157] : memref<1x1x32xf32, #tpu.memory_space<vmem>>, vector<1x1x32xf32>
    %209 = vector.shape_cast %208 : vector<1x1x32xf32> to vector<1x32xf32>
    %c0_158 = arith.constant 0 : index
    %c0_159 = arith.constant 0 : index
    %c0_160 = arith.constant 0 : index
    %210 = vector.load %arg18[%c0_158, %c0_159, %c0_160] : memref<1x1x32xf32, #tpu.memory_space<vmem>>, vector<1x1x32xf32>
    %211 = vector.shape_cast %210 : vector<1x1x32xf32> to vector<1x32xf32>
    %cst_161 = arith.constant dense<0.000000e+00> : vector<8xf32>
    %212 = vector.multi_reduction <add>, %207, %cst_161 [1] : vector<8x32xf32> to vector<8xf32>
    %213 = vector.shape_cast %212 : vector<8xf32> to vector<8x1xf32>
    %cst_162 = arith.constant 3.200000e+01 : f32
    %214 = vector.broadcast %cst_162 : f32 to vector<8x1xf32>
    %215 = arith.divf %213, %214 : vector<8x1xf32>
    %216 = vector.broadcast %215 : vector<8x1xf32> to vector<8x32xf32>
    %217 = arith.subf %207, %216 : vector<8x32xf32>
    %218 = arith.mulf %217, %217 : vector<8x32xf32>
    %cst_163 = arith.constant dense<0.000000e+00> : vector<8xf32>
    %219 = vector.multi_reduction <add>, %218, %cst_163 [1] : vector<8x32xf32> to vector<8xf32>
    %220 = vector.shape_cast %219 : vector<8xf32> to vector<8x1xf32>
    %cst_164 = arith.constant 3.200000e+01 : f32
    %221 = vector.broadcast %cst_164 : f32 to vector<8x1xf32>
    %222 = arith.divf %220, %221 : vector<8x1xf32>
    %223 = vector.broadcast %215 : vector<8x1xf32> to vector<8x32xf32>
    %224 = arith.subf %207, %223 : vector<8x32xf32>
    %cst_165 = arith.constant 9.99999974E-6 : f32
    %225 = vector.broadcast %cst_165 : f32 to vector<8x1xf32>
    %226 = arith.addf %222, %225 : vector<8x1xf32>
    %227 = math.rsqrt %226 : vector<8x1xf32>
    %228 = vector.broadcast %227 : vector<8x1xf32> to vector<8x32xf32>
    %229 = arith.mulf %224, %228 : vector<8x32xf32>
    %230 = vector.broadcast %209 : vector<1x32xf32> to vector<8x32xf32>
    %231 = arith.mulf %229, %230 : vector<8x32xf32>
    %232 = vector.broadcast %211 : vector<1x32xf32> to vector<8x32xf32>
    %233 = arith.addf %231, %232 : vector<8x32xf32>
    %234 = arith.truncf %233 : vector<8x32xf32> to vector<8x32xbf16>
    %c0_166 = arith.constant 0 : index
    %c0_167 = arith.constant 0 : index
    %235 = vector.load %arg22[%c0_166, %c0_167] : memref<8x32xbf16, #tpu.memory_space<vmem>>, vector<8x32xbf16>
    tpu.vector_store %arg22[%c0_166, %c0_167], %234 {strides = array<i32>} : memref<8x32xbf16, #tpu.memory_space<vmem>>, vector<8x32xbf16>,
    %c1_i32 = arith.constant 1 : i32
    %236 = arith.cmpi eq, %arg1, %c1_i32 : i32
    %237 = arith.extui %236 : i1 to i32
    %c0_i32_168 = arith.constant 0 : i32
    %238 = arith.cmpi ne, %237, %c0_i32_168 : i32
    scf.if %238 {
      %cst_169 = arith.constant dense<0.000000e+00> : vector<32xf32>
      %239 = vector.multi_reduction <add>, %233, %cst_169 [0] : vector<8x32xf32> to vector<32xf32>
      %240 = vector.shape_cast %239 : vector<32xf32> to vector<1x32xf32>
      %cst_170 = arith.constant 8.000000e+00 : f32
      %241 = vector.broadcast %cst_170 : f32 to vector<1x32xf32>
      %242 = arith.divf %240, %241 : vector<1x32xf32>
      %243 = arith.truncf %242 : vector<1x32xf32> to vector<1x32xbf16>
      %c0_171 = arith.constant 0 : index
      %c0_172 = arith.constant 0 : index
      %244 = vector.load %arg19[%c0_171, %c0_172] : memref<32x128xbf16, #tpu.memory_space<vmem>>, vector<32x128xbf16>
      %cst_173 = arith.constant dense<0.000000e+00> : vector<1x128xf32>
      %245 = tpu.matmul %243, %244, %cst_173 {dimension_numbers = #tpu.dot_dimension_numbers<[1], [0], [0], [1], [0, 0, 1, 1], [], []>} : vector<1x32xbf16>, vector<32x128xbf16>, vector<1x128xf32> -> vector<1x128xf32>
      %c0_174 = arith.constant 0 : index
      %c0_175 = arith.constant 0 : index
      %246 = vector.load %arg20[%c0_174, %c0_175] : memref<1x128xf32, #tpu.memory_space<vmem>>, vector<1x128xf32>
      %247 = arith.addf %245, %246 : vector<1x128xf32>
      %c0_176 = arith.constant 0 : index
      %c0_177 = arith.constant 0 : index
      %c0_178 = arith.constant 0 : index
      %248 = vector.load %arg21[%c0_176, %c0_177, %c0_178] : memref<1x1x128xf32, #tpu.memory_space<vmem>>, vector<1x1x128xf32>
      %249 = vector.shape_cast %248 : vector<1x1x128xf32> to vector<1x128xf32>
      %250 = vector.shape_cast %247 : vector<1x128xf32> to vector<1x1x128xf32>
      tpu.vector_store %arg21[%c0_176, %c0_177, %c0_178], %250 {strides = array<i32>} : memref<1x1x128xf32, #tpu.memory_space<vmem>>, vector<1x1x128xf32>,
    } else {
    }
    return
  }
  func.func @transform_0(%arg0: i32, %arg1: i32) -> (i32, i32, i32) {
    %c0_i32 = arith.constant 0 : i32
    %c0_i32_0 = arith.constant 0 : i32
    %c0_i32_1 = arith.constant 0 : i32
    return %arg0, %c0_i32, %c0_i32_0 : i32, i32, i32
  }
  func.func @transform_1(%arg0: i32, %arg1: i32) -> (i32, i32, i32, i32) {
    %c0_i32 = arith.constant 0 : i32
    %c0_i32_0 = arith.constant 0 : i32
    %c0_i32_1 = arith.constant 0 : i32
    %c0_i32_2 = arith.constant 0 : i32
    return %arg1, %c0_i32, %c0_i32_0, %c0_i32_1 : i32, i32, i32, i32
  }
  func.func @transform_2(%arg0: i32, %arg1: i32) -> (i32, i32, i32, i32) {
    %c0_i32 = arith.constant 0 : i32
    %c0_i32_0 = arith.constant 0 : i32
    %c0_i32_1 = arith.constant 0 : i32
    %c0_i32_2 = arith.constant 0 : i32
    return %arg1, %c0_i32, %c0_i32_0, %c0_i32_1 : i32, i32, i32, i32
  }
  func.func @transform_3(%arg0: i32, %arg1: i32) -> (i32, i32, i32, i32) {
    %c0_i32 = arith.constant 0 : i32
    %c0_i32_0 = arith.constant 0 : i32
    %c0_i32_1 = arith.constant 0 : i32
    %c0_i32_2 = arith.constant 0 : i32
    return %arg1, %c0_i32, %c0_i32_0, %c0_i32_1 : i32, i32, i32, i32
  }
  func.func @transform_4(%arg0: i32, %arg1: i32) -> (i32, i32, i32, i32) {
    %c0_i32 = arith.constant 0 : i32
    %c0_i32_0 = arith.constant 0 : i32
    %c0_i32_1 = arith.constant 0 : i32
    %c0_i32_2 = arith.constant 0 : i32
    return %arg1, %c0_i32, %c0_i32_0, %c0_i32_1 : i32, i32, i32, i32
  }
  func.func @transform_5(%arg0: i32, %arg1: i32) -> (i32, i32, i32, i32) {
    %c0_i32 = arith.constant 0 : i32
    %c0_i32_0 = arith.constant 0 : i32
    %c0_i32_1 = arith.constant 0 : i32
    %c0_i32_2 = arith.constant 0 : i32
    return %arg1, %c0_i32, %c0_i32_0, %c0_i32_1 : i32, i32, i32, i32
  }
  func.func @transform_6(%arg0: i32, %arg1: i32) -> (i32, i32, i32, i32) {
    %c0_i32 = arith.constant 0 : i32
    %c0_i32_0 = arith.constant 0 : i32
    %c0_i32_1 = arith.constant 0 : i32
    %c0_i32_2 = arith.constant 0 : i32
    return %arg1, %c0_i32, %c0_i32_0, %c0_i32_1 : i32, i32, i32, i32
  }
  func.func @transform_7(%arg0: i32, %arg1: i32) -> (i32, i32, i32) {
    %c0_i32 = arith.constant 0 : i32
    %c0_i32_0 = arith.constant 0 : i32
    %c0_i32_1 = arith.constant 0 : i32
    return %arg1, %c0_i32, %c0_i32_0 : i32, i32, i32
  }
  func.func @transform_8(%arg0: i32, %arg1: i32) -> (i32, i32, i32) {
    %c0_i32 = arith.constant 0 : i32
    %c0_i32_0 = arith.constant 0 : i32
    %c0_i32_1 = arith.constant 0 : i32
    return %arg1, %c0_i32, %c0_i32_0 : i32, i32, i32
  }
  func.func @transform_9(%arg0: i32, %arg1: i32) -> (i32, i32, i32) {
    %c0_i32 = arith.constant 0 : i32
    %c0_i32_0 = arith.constant 0 : i32
    %c0_i32_1 = arith.constant 0 : i32
    return %arg1, %c0_i32, %c0_i32_0 : i32, i32, i32
  }
  func.func @transform_10(%arg0: i32, %arg1: i32) -> (i32, i32, i32) {
    %c0_i32 = arith.constant 0 : i32
    %c0_i32_0 = arith.constant 0 : i32
    %c0_i32_1 = arith.constant 0 : i32
    return %arg1, %c0_i32, %c0_i32_0 : i32, i32, i32
  }
  func.func @transform_11(%arg0: i32, %arg1: i32) -> (i32, i32, i32) {
    %c0_i32 = arith.constant 0 : i32
    %c0_i32_0 = arith.constant 0 : i32
    %c0_i32_1 = arith.constant 0 : i32
    return %arg1, %c0_i32, %c0_i32_0 : i32, i32, i32
  }
  func.func @transform_12(%arg0: i32, %arg1: i32) -> (i32, i32, i32) {
    %c0_i32 = arith.constant 0 : i32
    %c0_i32_0 = arith.constant 0 : i32
    %c0_i32_1 = arith.constant 0 : i32
    return %arg1, %c0_i32, %c0_i32_0 : i32, i32, i32
  }
  func.func @transform_13(%arg0: i32, %arg1: i32) -> (i32, i32, i32) {
    %c0_i32 = arith.constant 0 : i32
    %c0_i32_0 = arith.constant 0 : i32
    %c0_i32_1 = arith.constant 0 : i32
    return %arg1, %c0_i32, %c0_i32_0 : i32, i32, i32
  }
  func.func @transform_14(%arg0: i32, %arg1: i32) -> (i32, i32, i32) {
    %c0_i32 = arith.constant 0 : i32
    %c0_i32_0 = arith.constant 0 : i32
    %c0_i32_1 = arith.constant 0 : i32
    return %arg1, %c0_i32, %c0_i32_0 : i32, i32, i32
  }
  func.func @transform_15(%arg0: i32, %arg1: i32) -> (i32, i32, i32) {
    %c0_i32 = arith.constant 0 : i32
    %c0_i32_0 = arith.constant 0 : i32
    %c0_i32_1 = arith.constant 0 : i32
    return %arg1, %c0_i32, %c0_i32_0 : i32, i32, i32
  }
  func.func @transform_16(%arg0: i32, %arg1: i32) -> (i32, i32, i32) {
    %c0_i32 = arith.constant 0 : i32
    %c0_i32_0 = arith.constant 0 : i32
    %c0_i32_1 = arith.constant 0 : i32
    return %arg1, %c0_i32, %c0_i32_0 : i32, i32, i32
  }
  func.func @transform_17(%arg0: i32, %arg1: i32) -> (i32, i32) {
    %c0_i32 = arith.constant 0 : i32
    %c0_i32_0 = arith.constant 0 : i32
    %c0_i32_1 = arith.constant 0 : i32
    return %c0_i32, %c0_i32_0 : i32, i32
  }
  func.func @transform_18(%arg0: i32, %arg1: i32) -> (i32, i32) {
    %c0_i32 = arith.constant 0 : i32
    %c0_i32_0 = arith.constant 0 : i32
    %c0_i32_1 = arith.constant 0 : i32
    return %c0_i32, %c0_i32_0 : i32, i32
  }
  func.func @transform_19(%arg0: i32, %arg1: i32) -> (i32, i32, i32) {
    %c0_i32 = arith.constant 0 : i32
    %c0_i32_0 = arith.constant 0 : i32
    %c0_i32_1 = arith.constant 0 : i32
    return %arg0, %c0_i32, %c0_i32_0 : i32, i32, i32
  }
}

</mosaic_0001>

<llo_original>
// kernel: face_emotion_transformer.1
$region0: #{face_emotion_transformer.1}
  #allocation0 [shape = 'u32[]', space=smem, size = 0x4, offset = 0x4, fixed_abs, tag = 'smem constant byte address 0x4 - core index']
  #allocation1 [shape = 'u32[72,128]{1,0:T(1,128)}', space=vmem, size = 0x9000, scoped, tag = 'internal scratch']
  #allocation2 [shape = 'bf16[8,32]{1,0:T(8,128)(2,1)}', space=vmem, size = 0x800, scoped, tag = 'scratch operand']
  %s0 = inlined_call_operand.vmem [shape: bf16[2,8,32], index: 0, kind: input, shape index: {}]
  %s1 = inlined_call_operand.vmem [shape: bf16[2,4,32,8], index: 1, kind: input, shape index: {}]
  %s2 = inlined_call_operand.vmem [shape: bf16[2,4,32,8], index: 2, kind: input, shape index: {}]
  %s3 = inlined_call_operand.vmem [shape: bf16[2,4,32,8], index: 3, kind: input, shape index: {}]
  %s4 = inlined_call_operand.vmem [shape: f32[2,4,1,8], index: 4, kind: input, shape index: {}]
  %s5 = inlined_call_operand.vmem [shape: f32[2,4,1,8], index: 5, kind: input, shape index: {}]
  %s6 = inlined_call_operand.vmem [shape: f32[2,4,1,8], index: 6, kind: input, shape index: {}]
  %s7 = inlined_call_operand.vmem [shape: bf16[2,32,32], index: 7, kind: input, shape index: {}]
  %s8 = inlined_call_operand.vmem [shape: f32[2,1,32], index: 8, kind: input, shape index: {}]
  %s9 = inlined_call_operand.vmem [shape: f32[2,1,32], index: 9, kind: input, shape index: {}]
  %s10 = inlined_call_operand.vmem [shape: f32[2,1,32], index: 10, kind: input, shape index: {}]
  %s11 = inlined_call_operand.vmem [shape: bf16[2,32,64], index: 11, kind: input, shape index: {}]
  %s12 = inlined_call_operand.vmem [shape: f32[2,1,64], index: 12, kind: input, shape index: {}]
  %s13 = inlined_call_operand.vmem [shape: bf16[2,64,32], index: 13, kind: input, shape index: {}]
  %s14 = inlined_call_operand.vmem [shape: f32[2,1,32], index: 14, kind: input, shape index: {}]
  %s15 = inlined_call_operand.vmem [shape: f32[2,1,32], index: 15, kind: input, shape index: {}]
  %s16 = inlined_call_operand.vmem [shape: f32[2,1,32], index: 16, kind: input, shape index: {}]
  %s17 = inlined_call_operand.vmem [shape: bf16[32,128], index: 17, kind: input, shape index: {}]
  %s18 = inlined_call_operand.vmem [shape: f32[1,128], index: 18, kind: input, shape index: {}]
  %s19 = inlined_call_operand.hbm [shape: f32[2,1,128], index: 19, kind: output, shape index: {}]
  %s20 = sld [smem:[#allocation0]]
  $region117: #{face_emotion_transformer.1} parent=0
    _
  %s22 = ssub.s32 1, %s20
  %s23 = scalar_select 0, %s22, %s20
  $region1: #{face_emotion_transformer.1} parent=0
    #allocation3 [shape = 'u8[1024]{0}', space=vmem, size = 0x400, scoped, tag = 'output window, operand 0']
    #allocation4 [shape = 's32[2]{0}', space=sflag, size = 0x8, scoped, tag = 'scoped memory for face_emotion_transformer.1']
    %24 = vsyncpa [#allocation4], 0
    %s25 = scalar_lea.sflag [#allocation4], 1
    %26 = vsyncpa %s25, 0
    loop: start=0, step=1, limit=6
    $region2: #{face_emotion_transformer.1} parent=1 // loop_pre_header
      _
    $region3: #{face_emotion_transformer.1} parent=1 // loop_header
      %s28 = sphi 0, %s32
      %p29 = scmp.ge.s32.totalorder %s28, 6
      %s35 = sphi 0, %s47
      %s36 = sphi 0, %s43
      %s37 = sphi 0, %s35
      %s38 = sphi 0, %s36
      %s39 = sphi 0, %s37
      %s40 = sphi 0, %s38
      %s50 = sphi 0, %s52
      %s53 = sphi 0, %s50
      %s54 = sphi 0, %s53
      %s70 = sphi 0, %s54
      %s76 = sphi 0, %s78
      %s79 = sphi 0, %s76
      %s80 = sphi 0, %s79
      %s96 = sphi 0, %s80
      %s102 = sphi 0, %s104
      %s105 = sphi 0, %s102
      %s106 = sphi 0, %s105
      %s122 = sphi 0, %s106
      %s128 = sphi 0, %s130
      %s131 = sphi 0, %s128
      %s132 = sphi 0, %s131
      %s148 = sphi 0, %s132
      %s154 = sphi 0, %s156
      %s157 = sphi 0, %s154
      %s158 = sphi 0, %s157
      %s174 = sphi 0, %s158
      %s180 = sphi 0, %s182
      %s183 = sphi 0, %s180
      %s184 = sphi 0, %s183
      %s200 = sphi 0, %s184
      %s206 = sphi 0, %s208
      %s209 = sphi 0, %s206
      %s210 = sphi 0, %s209
      %s226 = sphi 0, %s210
      %s232 = sphi 0, %s234
      %s235 = sphi 0, %s232
      %s236 = sphi 0, %s235
      %s252 = sphi 0, %s236
      %s258 = sphi 0, %s260
      %s261 = sphi 0, %s258
      %s262 = sphi 0, %s261
      %s278 = sphi 0, %s262
      %s284 = sphi 0, %s286
      %s287 = sphi 0, %s284
      %s288 = sphi 0, %s287
      %s304 = sphi 0, %s288
      %s310 = sphi 0, %s312
      %s313 = sphi 0, %s310
      %s314 = sphi 0, %s313
      %s330 = sphi 0, %s314
      %s336 = sphi 0, %s338
      %s339 = sphi 0, %s336
      %s340 = sphi 0, %s339
      %s356 = sphi 0, %s340
      %s362 = sphi 0, %s364
      %s365 = sphi 0, %s362
      %s366 = sphi 0, %s365
      %s382 = sphi 0, %s366
      %s388 = sphi 0, %s390
      %s391 = sphi 0, %s388
      %s392 = sphi 0, %s391
      %s408 = sphi 0, %s392
      %s414 = sphi 0, %s416
      %s417 = sphi 0, %s414
      %s418 = sphi 0, %s417
      %s434 = sphi 0, %s418
      %s440 = sphi 0, %s442
      %s443 = sphi 0, %s440
      %s444 = sphi 0, %s443
      %s460 = sphi 0, %s444
      %s466 = sphi 0, %s468
      %s469 = sphi 0, %s466
      %s470 = sphi 0, %s469
      %s486 = sphi 0, %s470
      %s490 = sphi 0, %s490
      %s492 = sphi 0, %s490
      %s493 = sphi 0, %s492
      %s507 = sphi 0, %s493
      %s511 = sphi 0, %s511
      %s513 = sphi 0, %s511
      %s514 = sphi 0, %s513
      %s528 = sphi 0, %s514
      %s534 = sphi 0, %s536
      %s537 = sphi 0, %s534
      %s538 = sphi 0, %s537
      %s554 = sphi 0, %s538
    $region4: #{face_emotion_transformer.1} parent=1 // loop_header_branch
      %31 = sbr.rel (%p29) target = $region8
    $region5: #{face_emotion_transformer.1} parent=1 // loop_body
      %s33 = ssub.s32 %s28, 1
      %s34 = ssub.s32 %s28, 2
      %s41 = sadd.s32 1, %s36
      %p42 = scmp.ge.s32.totalorder %s41, 2
      %s43 = scalar_select %p42, 0, %s41
      %s44 = sadd.s32 1, %s35
      %s45 = scalar_select %p42, %s44, %s35
      %p46 = scmp.ge.s32.totalorder %s45, 2
      %s47 = scalar_select %p46, 0, %s45
      %s48 = ssub.s32 %s35, %s47
      %p49 = scmp.eq.s32.totalorder %s48, 0
      %s51 = sadd.s32 %s50, 1
      %s52 = scalar_select %p49, %s50, %s51
      %p55 = pneg %p49
      %p56 = scmp.eq.s32.totalorder %s28, 3
      %p57 = por %p55, %p56
      %p58 = scmp.ne.s32.totalorder %s50, %s53
      %p59 = scmp.eq.s32.totalorder %s28, 0
      %p60 = por %p58, %p59
      %p61 = scmp.ne.s32.totalorder %s50, %s53
      %p62 = scmp.eq.s32.totalorder %s33, 3
      %p63 = por %p61, %p62
      %p64 = scmp.ne.s32.totalorder %s53, %s54
      %p65 = scmp.eq.s32.totalorder %s33, 0
      %p66 = por %p64, %p65
      %p67 = scmp.ne.s32.totalorder %s53, %s54
      %p68 = scmp.eq.s32.totalorder %s34, 3
      %p69 = por %p67, %p68
      %p71 = scmp.ne.s32.totalorder %s54, %s70
      %p72 = scmp.eq.s32.totalorder %s34, 0
      %p73 = por %p71, %p72
      %s74 = ssub.s32 %s36, %s43
      %p75 = scmp.eq.s32.totalorder %s74, 0
      %s77 = sadd.s32 %s76, 1
      %s78 = scalar_select %p75, %s76, %s77
      %p81 = pneg %p75
      %p82 = scmp.eq.s32.totalorder %s28, 3
      %p83 = por %p81, %p82
      %p84 = scmp.ne.s32.totalorder %s76, %s79
      %p85 = scmp.eq.s32.totalorder %s28, 0
      %p86 = por %p84, %p85
      %p87 = scmp.ne.s32.totalorder %s76, %s79
      %p88 = scmp.eq.s32.totalorder %s33, 3
      %p89 = por %p87, %p88
      %p90 = scmp.ne.s32.totalorder %s79, %s80
      %p91 = scmp.eq.s32.totalorder %s33, 0
      %p92 = por %p90, %p91
      %p93 = scmp.ne.s32.totalorder %s79, %s80
      %p94 = scmp.eq.s32.totalorder %s34, 3
      %p95 = por %p93, %p94
      %p97 = scmp.ne.s32.totalorder %s80, %s96
      %p98 = scmp.eq.s32.totalorder %s34, 0
      %p99 = por %p97, %p98
      %s100 = ssub.s32 %s36, %s43
      %p101 = scmp.eq.s32.totalorder %s100, 0
      %s103 = sadd.s32 %s102, 1
      %s104 = scalar_select %p101, %s102, %s103
      %p107 = pneg %p101
      %p108 = scmp.eq.s32.totalorder %s28, 3
      %p109 = por %p107, %p108
      %p110 = scmp.ne.s32.totalorder %s102, %s105
      %p111 = scmp.eq.s32.totalorder %s28, 0
      %p112 = por %p110, %p111
      %p113 = scmp.ne.s32.totalorder %s102, %s105
      %p114 = scmp.eq.s32.totalorder %s33, 3
      %p115 = por %p113, %p114
      %p116 = scmp.ne.s32.totalorder %s105, %s106
      %p117 = scmp.eq.s32.totalorder %s33, 0
      %p118 = por %p116, %p117
      %p119 = scmp.ne.s32.totalorder %s105, %s106
      %p120 = scmp.eq.s32.totalorder %s34, 3
      %p121 = por %p119, %p120
      %p123 = scmp.ne.s32.totalorder %s106, %s122
      %p124 = scmp.eq.s32.totalorder %s34, 0
      %p125 = por %p123, %p124
      %s126 = ssub.s32 %s36, %s43
      %p127 = scmp.eq.s32.totalorder %s126, 0
      %s129 = sadd.s32 %s128, 1
      %s130 = scalar_select %p127, %s128, %s129
      %p133 = pneg %p127
      %p134 = scmp.eq.s32.totalorder %s28, 3
      %p135 = por %p133, %p134
      %p136 = scmp.ne.s32.totalorder %s128, %s131
      %p137 = scmp.eq.s32.totalorder %s28, 0
      %p138 = por %p136, %p137
      %p139 = scmp.ne.s32.totalorder %s128, %s131
      %p140 = scmp.eq.s32.totalorder %s33, 3
      %p141 = por %p139, %p140
      %p142 = scmp.ne.s32.totalorder %s131, %s132
      %p143 = scmp.eq.s32.totalorder %s33, 0
      %p144 = por %p142, %p143
      %p145 = scmp.ne.s32.totalorder %s131, %s132
      %p146 = scmp.eq.s32.totalorder %s34, 3
      %p147 = por %p145, %p146
      %p149 = scmp.ne.s32.totalorder %s132, %s148
      %p150 = scmp.eq.s32.totalorder %s34, 0
      %p151 = por %p149, %p150
      %s152 = ssub.s32 %s36, %s43
      %p153 = scmp.eq.s32.totalorder %s152, 0
      %s155 = sadd.s32 %s154, 1
      %s156 = scalar_select %p153, %s154, %s155
      %p159 = pneg %p153
      %p160 = scmp.eq.s32.totalorder %s28, 3
      %p161 = por %p159, %p160
      %p162 = scmp.ne.s32.totalorder %s154, %s157
      %p163 = scmp.eq.s32.totalorder %s28, 0
      %p164 = por %p162, %p163
      %p165 = scmp.ne.s32.totalorder %s154, %s157
      %p166 = scmp.eq.s32.totalorder %s33, 3
      %p167 = por %p165, %p166
      %p168 = scmp.ne.s32.totalorder %s157, %s158
      %p169 = scmp.eq.s32.totalorder %s33, 0
      %p170 = por %p168, %p169
      %p171 = scmp.ne.s32.totalorder %s157, %s158
      %p172 = scmp.eq.s32.totalorder %s34, 3
      %p173 = por %p171, %p172
      %p175 = scmp.ne.s32.totalorder %s158, %s174
      %p176 = scmp.eq.s32.totalorder %s34, 0
      %p177 = por %p175, %p176
      %s178 = ssub.s32 %s36, %s43
      %p179 = scmp.eq.s32.totalorder %s178, 0
      %s181 = sadd.s32 %s180, 1
      %s182 = scalar_select %p179, %s180, %s181
      %p185 = pneg %p179
      %p186 = scmp.eq.s32.totalorder %s28, 3
      %p187 = por %p185, %p186
      %p188 = scmp.ne.s32.totalorder %s180, %s183
      %p189 = scmp.eq.s32.totalorder %s28, 0
      %p190 = por %p188, %p189
      %p191 = scmp.ne.s32.totalorder %s180, %s183
      %p192 = scmp.eq.s32.totalorder %s33, 3
      %p193 = por %p191, %p192
      %p194 = scmp.ne.s32.totalorder %s183, %s184
      %p195 = scmp.eq.s32.totalorder %s33, 0
      %p196 = por %p194, %p195
      %p197 = scmp.ne.s32.totalorder %s183, %s184
      %p198 = scmp.eq.s32.totalorder %s34, 3
      %p199 = por %p197, %p198
      %p201 = scmp.ne.s32.totalorder %s184, %s200
      %p202 = scmp.eq.s32.totalorder %s34, 0
      %p203 = por %p201, %p202
      %s204 = ssub.s32 %s36, %s43
      %p205 = scmp.eq.s32.totalorder %s204, 0
      %s207 = sadd.s32 %s206, 1
      %s208 = scalar_select %p205, %s206, %s207
      %p211 = pneg %p205
      %p212 = scmp.eq.s32.totalorder %s28, 3
      %p213 = por %p211, %p212
      %p214 = scmp.ne.s32.totalorder %s206, %s209
      %p215 = scmp.eq.s32.totalorder %s28, 0
      %p216 = por %p214, %p215
      %p217 = scmp.ne.s32.totalorder %s206, %s209
      %p218 = scmp.eq.s32.totalorder %s33, 3
      %p219 = por %p217, %p218
      %p220 = scmp.ne.s32.totalorder %s209, %s210
      %p221 = scmp.eq.s32.totalorder %s33, 0
      %p222 = por %p220, %p221
      %p223 = scmp.ne.s32.totalorder %s209, %s210
      %p224 = scmp.eq.s32.totalorder %s34, 3
      %p225 = por %p223, %p224
      %p227 = scmp.ne.s32.totalorder %s210, %s226
      %p228 = scmp.eq.s32.totalorder %s34, 0
      %p229 = por %p227, %p228
      %s230 = ssub.s32 %s36, %s43
      %p231 = scmp.eq.s32.totalorder %s230, 0
      %s233 = sadd.s32 %s232, 1
      %s234 = scalar_select %p231, %s232, %s233
      %p237 = pneg %p231
      %p238 = scmp.eq.s32.totalorder %s28, 3
      %p239 = por %p237, %p238
      %p240 = scmp.ne.s32.totalorder %s232, %s235
      %p241 = scmp.eq.s32.totalorder %s28, 0
      %p242 = por %p240, %p241
      %p243 = scmp.ne.s32.totalorder %s232, %s235
      %p244 = scmp.eq.s32.totalorder %s33, 3
      %p245 = por %p243, %p244
      %p246 = scmp.ne.s32.totalorder %s235, %s236
      %p247 = scmp.eq.s32.totalorder %s33, 0
      %p248 = por %p246, %p247
      %p249 = scmp.ne.s32.totalorder %s235, %s236
      %p250 = scmp.eq.s32.totalorder %s34, 3
      %p251 = por %p249, %p250
      %p253 = scmp.ne.s32.totalorder %s236, %s252
      %p254 = scmp.eq.s32.totalorder %s34, 0
      %p255 = por %p253, %p254
      %s256 = ssub.s32 %s36, %s43
      %p257 = scmp.eq.s32.totalorder %s256, 0
      %s259 = sadd.s32 %s258, 1
      %s260 = scalar_select %p257, %s258, %s259
      %p263 = pneg %p257
      %p264 = scmp.eq.s32.totalorder %s28, 3
      %p265 = por %p263, %p264
      %p266 = scmp.ne.s32.totalorder %s258, %s261
      %p267 = scmp.eq.s32.totalorder %s28, 0
      %p268 = por %p266, %p267
      %p269 = scmp.ne.s32.totalorder %s258, %s261
      %p270 = scmp.eq.s32.totalorder %s33, 3
      %p271 = por %p269, %p270
      %p272 = scmp.ne.s32.totalorder %s261, %s262
      %p273 = scmp.eq.s32.totalorder %s33, 0
      %p274 = por %p272, %p273
      %p275 = scmp.ne.s32.totalorder %s261, %s262
      %p276 = scmp.eq.s32.totalorder %s34, 3
      %p277 = por %p275, %p276
      %p279 = scmp.ne.s32.totalorder %s262, %s278
      %p280 = scmp.eq.s32.totalorder %s34, 0
      %p281 = por %p279, %p280
      %s282 = ssub.s32 %s36, %s43
      %p283 = scmp.eq.s32.totalorder %s282, 0
      %s285 = sadd.s32 %s284, 1
      %s286 = scalar_select %p283, %s284, %s285
      %p289 = pneg %p283
      %p290 = scmp.eq.s32.totalorder %s28, 3
      %p291 = por %p289, %p290
      %p292 = scmp.ne.s32.totalorder %s284, %s287
      %p293 = scmp.eq.s32.totalorder %s28, 0
      %p294 = por %p292, %p293
      %p295 = scmp.ne.s32.totalorder %s284, %s287
      %p296 = scmp.eq.s32.totalorder %s33, 3
      %p297 = por %p295, %p296
      %p298 = scmp.ne.s32.totalorder %s287, %s288
      %p299 = scmp.eq.s32.totalorder %s33, 0
      %p300 = por %p298, %p299
      %p301 = scmp.ne.s32.totalorder %s287, %s288
      %p302 = scmp.eq.s32.totalorder %s34, 3
      %p303 = por %p301, %p302
      %p305 = scmp.ne.s32.totalorder %s288, %s304
      %p306 = scmp.eq.s32.totalorder %s34, 0
      %p307 = por %p305, %p306
      %s308 = ssub.s32 %s36, %s43
      %p309 = scmp.eq.s32.totalorder %s308, 0
      %s311 = sadd.s32 %s310, 1
      %s312 = scalar_select %p309, %s310, %s311
      %p315 = pneg %p309
      %p316 = scmp.eq.s32.totalorder %s28, 3
      %p317 = por %p315, %p316
      %p318 = scmp.ne.s32.totalorder %s310, %s313
      %p319 = scmp.eq.s32.totalorder %s28, 0
      %p320 = por %p318, %p319
      %p321 = scmp.ne.s32.totalorder %s310, %s313
      %p322 = scmp.eq.s32.totalorder %s33, 3
      %p323 = por %p321, %p322
      %p324 = scmp.ne.s32.totalorder %s313, %s314
      %p325 = scmp.eq.s32.totalorder %s33, 0
      %p326 = por %p324, %p325
      %p327 = scmp.ne.s32.totalorder %s313, %s314
      %p328 = scmp.eq.s32.totalorder %s34, 3
      %p329 = por %p327, %p328
      %p331 = scmp.ne.s32.totalorder %s314, %s330
      %p332 = scmp.eq.s32.totalorder %s34, 0
      %p333 = por %p331, %p332
      %s334 = ssub.s32 %s36, %s43
      %p335 = scmp.eq.s32.totalorder %s334, 0
      %s337 = sadd.s32 %s336, 1
      %s338 = scalar_select %p335, %s336, %s337
      %p341 = pneg %p335
      %p342 = scmp.eq.s32.totalorder %s28, 3
      %p343 = por %p341, %p342
      %p344 = scmp.ne.s32.totalorder %s336, %s339
      %p345 = scmp.eq.s32.totalorder %s28, 0
      %p346 = por %p344, %p345
      %p347 = scmp.ne.s32.totalorder %s336, %s339
      %p348 = scmp.eq.s32.totalorder %s33, 3
      %p349 = por %p347, %p348
      %p350 = scmp.ne.s32.totalorder %s339, %s340
      %p351 = scmp.eq.s32.totalorder %s33, 0
      %p352 = por %p350, %p351
      %p353 = scmp.ne.s32.totalorder %s339, %s340
      %p354 = scmp.eq.s32.totalorder %s34, 3
      %p355 = por %p353, %p354
      %p357 = scmp.ne.s32.totalorder %s340, %s356
      %p358 = scmp.eq.s32.totalorder %s34, 0
      %p359 = por %p357, %p358
      %s360 = ssub.s32 %s36, %s43
      %p361 = scmp.eq.s32.totalorder %s360, 0
      %s363 = sadd.s32 %s362, 1
      %s364 = scalar_select %p361, %s362, %s363
      %p367 = pneg %p361
      %p368 = scmp.eq.s32.totalorder %s28, 3
      %p369 = por %p367, %p368
      %p370 = scmp.ne.s32.totalorder %s362, %s365
      %p371 = scmp.eq.s32.totalorder %s28, 0
      %p372 = por %p370, %p371
      %p373 = scmp.ne.s32.totalorder %s362, %s365
      %p374 = scmp.eq.s32.totalorder %s33, 3
      %p375 = por %p373, %p374
      %p376 = scmp.ne.s32.totalorder %s365, %s366
      %p377 = scmp.eq.s32.totalorder %s33, 0
      %p378 = por %p376, %p377
      %p379 = scmp.ne.s32.totalorder %s365, %s366
      %p380 = scmp.eq.s32.totalorder %s34, 3
      %p381 = por %p379, %p380
      %p383 = scmp.ne.s32.totalorder %s366, %s382
      %p384 = scmp.eq.s32.totalorder %s34, 0
      %p385 = por %p383, %p384
      %s386 = ssub.s32 %s36, %s43
      %p387 = scmp.eq.s32.totalorder %s386, 0
      %s389 = sadd.s32 %s388, 1
      %s390 = scalar_select %p387, %s388, %s389
      %p393 = pneg %p387
      %p394 = scmp.eq.s32.totalorder %s28, 3
      %p395 = por %p393, %p394
      %p396 = scmp.ne.s32.totalorder %s388, %s391
      %p397 = scmp.eq.s32.totalorder %s28, 0
      %p398 = por %p396, %p397
      %p399 = scmp.ne.s32.totalorder %s388, %s391
      %p400 = scmp.eq.s32.totalorder %s33, 3
      %p401 = por %p399, %p400
      %p402 = scmp.ne.s32.totalorder %s391, %s392
      %p403 = scmp.eq.s32.totalorder %s33, 0
      %p404 = por %p402, %p403
      %p405 = scmp.ne.s32.totalorder %s391, %s392
      %p406 = scmp.eq.s32.totalorder %s34, 3
      %p407 = por %p405, %p406
      %p409 = scmp.ne.s32.totalorder %s392, %s408
      %p410 = scmp.eq.s32.totalorder %s34, 0
      %p411 = por %p409, %p410
      %s412 = ssub.s32 %s36, %s43
      %p413 = scmp.eq.s32.totalorder %s412, 0
      %s415 = sadd.s32 %s414, 1
      %s416 = scalar_select %p413, %s414, %s415
      %p419 = pneg %p413
      %p420 = scmp.eq.s32.totalorder %s28, 3
      %p421 = por %p419, %p420
      %p422 = scmp.ne.s32.totalorder %s414, %s417
      %p423 = scmp.eq.s32.totalorder %s28, 0
      %p424 = por %p422, %p423
      %p425 = scmp.ne.s32.totalorder %s414, %s417
      %p426 = scmp.eq.s32.totalorder %s33, 3
      %p427 = por %p425, %p426
      %p428 = scmp.ne.s32.totalorder %s417, %s418
      %p429 = scmp.eq.s32.totalorder %s33, 0
      %p430 = por %p428, %p429
      %p431 = scmp.ne.s32.totalorder %s417, %s418
      %p432 = scmp.eq.s32.totalorder %s34, 3
      %p433 = por %p431, %p432
      %p435 = scmp.ne.s32.totalorder %s418, %s434
      %p436 = scmp.eq.s32.totalorder %s34, 0
      %p437 = por %p435, %p436
      %s438 = ssub.s32 %s36, %s43
      %p439 = scmp.eq.s32.totalorder %s438, 0
      %s441 = sadd.s32 %s440, 1
      %s442 = scalar_select %p439, %s440, %s441
      %p445 = pneg %p439
      %p446 = scmp.eq.s32.totalorder %s28, 3
      %p447 = por %p445, %p446
      %p448 = scmp.ne.s32.totalorder %s440, %s443
      %p449 = scmp.eq.s32.totalorder %s28, 0
      %p450 = por %p448, %p449
      %p451 = scmp.ne.s32.totalorder %s440, %s443
      %p452 = scmp.eq.s32.totalorder %s33, 3
      %p453 = por %p451, %p452
      %p454 = scmp.ne.s32.totalorder %s443, %s444
      %p455 = scmp.eq.s32.totalorder %s33, 0
      %p456 = por %p454, %p455
      %p457 = scmp.ne.s32.totalorder %s443, %s444
      %p458 = scmp.eq.s32.totalorder %s34, 3
      %p459 = por %p457, %p458
      %p461 = scmp.ne.s32.totalorder %s444, %s460
      %p462 = scmp.eq.s32.totalorder %s34, 0
      %p463 = por %p461, %p462
      %s464 = ssub.s32 %s36, %s43
      %p465 = scmp.eq.s32.totalorder %s464, 0
      %s467 = sadd.s32 %s466, 1
      %s468 = scalar_select %p465, %s466, %s467
      %p471 = pneg %p465
      %p472 = scmp.eq.s32.totalorder %s28, 3
      %p473 = por %p471, %p472
      %p474 = scmp.ne.s32.totalorder %s466, %s469
      %p475 = scmp.eq.s32.totalorder %s28, 0
      %p476 = por %p474, %p475
      %p477 = scmp.ne.s32.totalorder %s466, %s469
      %p478 = scmp.eq.s32.totalorder %s33, 3
      %p479 = por %p477, %p478
      %p480 = scmp.ne.s32.totalorder %s469, %s470
      %p481 = scmp.eq.s32.totalorder %s33, 0
      %p482 = por %p480, %p481
      %p483 = scmp.ne.s32.totalorder %s469, %s470
      %p484 = scmp.eq.s32.totalorder %s34, 3
      %p485 = por %p483, %p484
      %p487 = scmp.ne.s32.totalorder %s470, %s486
      %p488 = scmp.eq.s32.totalorder %s34, 0
      %p489 = por %p487, %p488
      %s491 = sadd.s32 %s490, 1
      %p494 = scmp.eq.s32.totalorder %s28, 3
      %p495 = scmp.ne.s32.totalorder %s490, %s492
      %p496 = scmp.eq.s32.totalorder %s28, 0
      %p497 = por %p495, %p496
      %p498 = scmp.ne.s32.totalorder %s490, %s492
      %p499 = scmp.eq.s32.totalorder %s33, 3
      %p500 = por %p498, %p499
      %p501 = scmp.ne.s32.totalorder %s492, %s493
      %p502 = scmp.eq.s32.totalorder %s33, 0
      %p503 = por %p501, %p502
      %p504 = scmp.ne.s32.totalorder %s492, %s493
      %p505 = scmp.eq.s32.totalorder %s34, 3
      %p506 = por %p504, %p505
      %p508 = scmp.ne.s32.totalorder %s493, %s507
      %p509 = scmp.eq.s32.totalorder %s34, 0
      %p510 = por %p508, %p509
      %s512 = sadd.s32 %s511, 1
      %p515 = scmp.eq.s32.totalorder %s28, 3
      %p516 = scmp.ne.s32.totalorder %s511, %s513
      %p517 = scmp.eq.s32.totalorder %s28, 0
      %p518 = por %p516, %p517
      %p519 = scmp.ne.s32.totalorder %s511, %s513
      %p520 = scmp.eq.s32.totalorder %s33, 3
      %p521 = por %p519, %p520
      %p522 = scmp.ne.s32.totalorder %s513, %s514
      %p523 = scmp.eq.s32.totalorder %s33, 0
      %p524 = por %p522, %p523
      %p525 = scmp.ne.s32.totalorder %s513, %s514
      %p526 = scmp.eq.s32.totalorder %s34, 3
      %p527 = por %p525, %p526
      %p529 = scmp.ne.s32.totalorder %s514, %s528
      %p530 = scmp.eq.s32.totalorder %s34, 0
      %p531 = por %p529, %p530
      %s532 = ssub.s32 %s35, %s47
      %p533 = scmp.eq.s32.totalorder %s532, 0
      %s535 = sadd.s32 %s534, 1
      %s536 = scalar_select %p533, %s534, %s535
      %p539 = pneg %p533
      %p540 = scmp.eq.s32.totalorder %s28, 3
      %p541 = por %p539, %p540
      %p542 = scmp.ne.s32.totalorder %s534, %s537
      %p543 = scmp.eq.s32.totalorder %s28, 0
      %p544 = por %p542, %p543
      %p545 = scmp.ne.s32.totalorder %s534, %s537
      %p546 = scmp.eq.s32.totalorder %s33, 3
      %p547 = por %p545, %p546
      %p548 = scmp.ne.s32.totalorder %s537, %s538
      %p549 = scmp.eq.s32.totalorder %s33, 0
      %p550 = por %p548, %p549
      %p551 = scmp.ne.s32.totalorder %s537, %s538
      %p552 = scmp.eq.s32.totalorder %s34, 3
      %p553 = por %p551, %p552
      %p555 = scmp.ne.s32.totalorder %s538, %s554
      %p556 = scmp.eq.s32.totalorder %s34, 0
      %p557 = por %p555, %p556
      %p558 = scmp.le.s32.totalorder 1, %s28
      %p559 = scmp.lt.s32.totalorder %s28, 5
      %p560 = pnand %p558, %p559
      %p561 = pneg %p560
      // Predicated region
      $region9: #{face_emotion_transformer.1} parent=5 // pred_check
        _
      $region10: #{face_emotion_transformer.1} parent=5 // pred_check_branch
        %563 = sbr.rel (%p560) target = $region12
      $region11: #{face_emotion_transformer.1} parent=5 // pred_region
        %s564 = ssub.s32 %s28, 1
        // Predicated region
        $region13: #{face_emotion_transformer.1} parent=11 // pred_check
          %p565 = pneg %p503
        $region14: #{face_emotion_transformer.1} parent=11 // pred_check_branch
          %567 = sbr.rel (%p565) target = $region16
        $region15: #{face_emotion_transformer.1} parent=11 // pred_region
          _
        $region16: #{face_emotion_transformer.1} parent=11 // pred_fallthru
          _
        // Predicated region
        $region17: #{face_emotion_transformer.1} parent=11 // pred_check
          %p568 = pneg %p524
        $region18: #{face_emotion_transformer.1} parent=11 // pred_check_branch
          %570 = sbr.rel (%p568) target = $region20
        $region19: #{face_emotion_transformer.1} parent=11 // pred_region
          _
        $region20: #{face_emotion_transformer.1} parent=11 // pred_fallthru
          _
      $region12: #{face_emotion_transformer.1} parent=5 // pred_fallthru
        _
      %p571 = scmp.lt.s32.totalorder %s28, 4
      // Predicated region
      $region21: #{face_emotion_transformer.1} parent=5 // pred_check
        %p572 = pneg %p571
      $region22: #{face_emotion_transformer.1} parent=5 // pred_check_branch
        %574 = sbr.rel (%p572) target = $region24
      $region23: #{face_emotion_transformer.1} parent=5 // pred_region
        // Predicated region
        $region25: #{face_emotion_transformer.1} parent=23 // pred_check
          %p575 = pneg %p60
        $region26: #{face_emotion_transformer.1} parent=23 // pred_check_branch
          %577 = sbr.rel (%p575) target = $region28
        $region27: #{face_emotion_transformer.1} parent=23 // pred_region
          %p578 = scmp.lt.s32.totalorder %s35, 1
          %s579 = scalar_select %p578, %s35, 1
          %s580 = smul.addr %s579, 4
          %s581 = scalar_lea.vmem %s0, %s580
        $region28: #{face_emotion_transformer.1} parent=23 // pred_fallthru
          _
        // Predicated region
        $region29: #{face_emotion_transformer.1} parent=23 // pred_check
          %p582 = pneg %p86
        $region30: #{face_emotion_transformer.1} parent=23 // pred_check_branch
          %584 = sbr.rel (%p582) target = $region32
        $region31: #{face_emotion_transformer.1} parent=23 // pred_region
          %p585 = scmp.lt.s32.totalorder %s36, 1
          %s586 = scalar_select %p585, %s36, 1
          %s587 = smul.addr %s586, 16
          %s588 = smul.addr %s587, 4
          %s589 = scalar_lea.vmem %s1, %s588
        $region32: #{face_emotion_transformer.1} parent=23 // pred_fallthru
          _
        // Predicated region
        $region33: #{face_emotion_transformer.1} parent=23 // pred_check
          %p590 = pneg %p112
        $region34: #{face_emotion_transformer.1} parent=23 // pred_check_branch
          %592 = sbr.rel (%p590) target = $region36
        $region35: #{face_emotion_transformer.1} parent=23 // pred_region
          %p593 = scmp.lt.s32.totalorder %s36, 1
          %s594 = scalar_select %p593, %s36, 1
          %s595 = smul.addr %s594, 16
          %s596 = smul.addr %s595, 4
          %s597 = scalar_lea.vmem %s2, %s596
        $region36: #{face_emotion_transformer.1} parent=23 // pred_fallthru
          _
        // Predicated region
        $region37: #{face_emotion_transformer.1} parent=23 // pred_check
          %p598 = pneg %p138
        $region38: #{face_emotion_transformer.1} parent=23 // pred_check_branch
          %600 = sbr.rel (%p598) target = $region40
        $region39: #{face_emotion_transformer.1} parent=23 // pred_region
          %p601 = scmp.lt.s32.totalorder %s36, 1
          %s602 = scalar_select %p601, %s36, 1
          %s603 = smul.addr %s602, 16
          %s604 = smul.addr %s603, 4
          %s605 = scalar_lea.vmem %s3, %s604
        $region40: #{face_emotion_transformer.1} parent=23 // pred_fallthru
          _
        // Predicated region
        $region41: #{face_emotion_transformer.1} parent=23 // pred_check
          %p606 = pneg %p164
        $region42: #{face_emotion_transformer.1} parent=23 // pred_check_branch
          %608 = sbr.rel (%p606) target = $region44
        $region43: #{face_emotion_transformer.1} parent=23 // pred_region
          %p609 = scmp.lt.s32.totalorder %s36, 1
          %s610 = scalar_select %p609, %s36, 1
          %s611 = smul.addr %s610, 4
          %s612 = scalar_lea.vmem %s4, %s611
        $region44: #{face_emotion_transformer.1} parent=23 // pred_fallthru
          _
        // Predicated region
        $region45: #{face_emotion_transformer.1} parent=23 // pred_check
          %p613 = pneg %p190
        $region46: #{face_emotion_transformer.1} parent=23 // pred_check_branch
          %615 = sbr.rel (%p613) target = $region48
        $region47: #{face_emotion_transformer.1} parent=23 // pred_region
          %p616 = scmp.lt.s32.totalorder %s36, 1
          %s617 = scalar_select %p616, %s36, 1
          %s618 = smul.addr %s617, 4
          %s619 = scalar_lea.vmem %s5, %s618
        $region48: #{face_emotion_transformer.1} parent=23 // pred_fallthru
          _
        // Predicated region
        $region49: #{face_emotion_transformer.1} parent=23 // pred_check
          %p620 = pneg %p216
        $region50: #{face_emotion_transformer.1} parent=23 // pred_check_branch
          %622 = sbr.rel (%p620) target = $region52
        $region51: #{face_emotion_transformer.1} parent=23 // pred_region
          %p623 = scmp.lt.s32.totalorder %s36, 1
          %s624 = scalar_select %p623, %s36, 1
          %s625 = smul.addr %s624, 4
          %s626 = scalar_lea.vmem %s6, %s625
        $region52: #{face_emotion_transformer.1} parent=23 // pred_fallthru
          _
        // Predicated region
        $region53: #{face_emotion_transformer.1} parent=23 // pred_check
          %p627 = pneg %p242
        $region54: #{face_emotion_transformer.1} parent=23 // pred_check_branch
          %629 = sbr.rel (%p627) target = $region56
        $region55: #{face_emotion_transformer.1} parent=23 // pred_region
          %p630 = scmp.lt.s32.totalorder %s36, 1
          %s631 = scalar_select %p630, %s36, 1
          %s632 = smul.addr %s631, 4
          %s633 = smul.addr %s632, 4
          %s634 = scalar_lea.vmem %s7, %s633
        $region56: #{face_emotion_transformer.1} parent=23 // pred_fallthru
          _
        // Predicated region
        $region57: #{face_emotion_transformer.1} parent=23 // pred_check
          %p635 = pneg %p268
        $region58: #{face_emotion_transformer.1} parent=23 // pred_check_branch
          %637 = sbr.rel (%p635) target = $region60
        $region59: #{face_emotion_transformer.1} parent=23 // pred_region
          %p638 = scmp.lt.s32.totalorder %s36, 1
          %s639 = scalar_select %p638, %s36, 1
          %s640 = scalar_lea.vmem %s8, %s639
        $region60: #{face_emotion_transformer.1} parent=23 // pred_fallthru
          _
        // Predicated region
        $region61: #{face_emotion_transformer.1} parent=23 // pred_check
          %p641 = pneg %p294
        $region62: #{face_emotion_transformer.1} parent=23 // pred_check_branch
          %643 = sbr.rel (%p641) target = $region64
        $region63: #{face_emotion_transformer.1} parent=23 // pred_region
          %p644 = scmp.lt.s32.totalorder %s36, 1
          %s645 = scalar_select %p644, %s36, 1
          %s646 = scalar_lea.vmem %s9, %s645
        $region64: #{face_emotion_transformer.1} parent=23 // pred_fallthru
          _
        // Predicated region
        $region65: #{face_emotion_transformer.1} parent=23 // pred_check
          %p647 = pneg %p320
        $region66: #{face_emotion_transformer.1} parent=23 // pred_check_branch
          %649 = sbr.rel (%p647) target = $region68
        $region67: #{face_emotion_transformer.1} parent=23 // pred_region
          %p650 = scmp.lt.s32.totalorder %s36, 1
          %s651 = scalar_select %p650, %s36, 1
          %s652 = scalar_lea.vmem %s10, %s651
        $region68: #{face_emotion_transformer.1} parent=23 // pred_fallthru
          _
        // Predicated region
        $region69: #{face_emotion_transformer.1} parent=23 // pred_check
          %p653 = pneg %p346
        $region70: #{face_emotion_transformer.1} parent=23 // pred_check_branch
          %655 = sbr.rel (%p653) target = $region72
        $region71: #{face_emotion_transformer.1} parent=23 // pred_region
          %p656 = scmp.lt.s32.totalorder %s36, 1
          %s657 = scalar_select %p656, %s36, 1
          %s658 = smul.addr %s657, 4
          %s659 = smul.addr %s658, 4
          %s660 = scalar_lea.vmem %s11, %s659
        $region72: #{face_emotion_transformer.1} parent=23 // pred_fallthru
          _
        // Predicated region
        $region73: #{face_emotion_transformer.1} parent=23 // pred_check
          %p661 = pneg %p372
        $region74: #{face_emotion_transformer.1} parent=23 // pred_check_branch
          %663 = sbr.rel (%p661) target = $region76
        $region75: #{face_emotion_transformer.1} parent=23 // pred_region
          %p664 = scmp.lt.s32.totalorder %s36, 1
          %s665 = scalar_select %p664, %s36, 1
          %s666 = scalar_lea.vmem %s12, %s665
        $region76: #{face_emotion_transformer.1} parent=23 // pred_fallthru
          _
        // Predicated region
        $region77: #{face_emotion_transformer.1} parent=23 // pred_check
          %p667 = pneg %p398
        $region78: #{face_emotion_transformer.1} parent=23 // pred_check_branch
          %669 = sbr.rel (%p667) target = $region80
        $region79: #{face_emotion_transformer.1} parent=23 // pred_region
          %p670 = scmp.lt.s32.totalorder %s36, 1
          %s671 = scalar_select %p670, %s36, 1
          %s672 = smul.addr %s671, 8
          %s673 = smul.addr %s672, 4
          %s674 = scalar_lea.vmem %s13, %s673
        $region80: #{face_emotion_transformer.1} parent=23 // pred_fallthru
          _
        // Predicated region
        $region81: #{face_emotion_transformer.1} parent=23 // pred_check
          %p675 = pneg %p424
        $region82: #{face_emotion_transformer.1} parent=23 // pred_check_branch
          %677 = sbr.rel (%p675) target = $region84
        $region83: #{face_emotion_transformer.1} parent=23 // pred_region
          %p678 = scmp.lt.s32.totalorder %s36, 1
          %s679 = scalar_select %p678, %s36, 1
          %s680 = scalar_lea.vmem %s14, %s679
        $region84: #{face_emotion_transformer.1} parent=23 // pred_fallthru
          _
        // Predicated region
        $region85: #{face_emotion_transformer.1} parent=23 // pred_check
          %p681 = pneg %p450
        $region86: #{face_emotion_transformer.1} parent=23 // pred_check_branch
          %683 = sbr.rel (%p681) target = $region88
        $region87: #{face_emotion_transformer.1} parent=23 // pred_region
          %p684 = scmp.lt.s32.totalorder %s36, 1
          %s685 = scalar_select %p684, %s36, 1
          %s686 = scalar_lea.vmem %s15, %s685
        $region88: #{face_emotion_transformer.1} parent=23 // pred_fallthru
          _
        // Predicated region
        $region89: #{face_emotion_transformer.1} parent=23 // pred_check
          %p687 = pneg %p476
        $region90: #{face_emotion_transformer.1} parent=23 // pred_check_branch
          %689 = sbr.rel (%p687) target = $region92
        $region91: #{face_emotion_transformer.1} parent=23 // pred_region
          %p690 = scmp.lt.s32.totalorder %s36, 1
          %s691 = scalar_select %p690, %s36, 1
          %s692 = scalar_lea.vmem %s16, %s691
        $region92: #{face_emotion_transformer.1} parent=23 // pred_fallthru
          _
      $region24: #{face_emotion_transformer.1} parent=5 // pred_fallthru
        _
      %p693 = scmp.le.s32.totalorder 1, %s28
      %p694 = scmp.lt.s32.totalorder %s28, 5
      %p695 = pnand %p693, %p694
      %p696 = pneg %p695
      // Predicated region
      $region93: #{face_emotion_transformer.1} parent=5 // pred_check
        _
      $region94: #{face_emotion_transformer.1} parent=5 // pred_check_branch
        %698 = sbr.rel (%p695) target = $region96
      $region95: #{face_emotion_transformer.1} parent=5 // pred_region
        %s699 = ssub.s32 %s28, 1
        %p700 = scmp.lt.s32.totalorder %s37, 1
        %s701 = scalar_select %p700, %s37, 1
        %s702 = smul.addr %s701, 4
        %s703 = scalar_lea.vmem %s0, %s702
        %p704 = pneg %p66
        %p705 = pneg %p63
        %p706 = scmp.lt.s32.totalorder %s38, 1
        %s707 = scalar_select %p706, %s38, 1
        %s708 = smul.addr %s707, 16
        %s709 = smul.addr %s708, 4
        %s710 = scalar_lea.vmem %s1, %s709
        %p711 = pneg %p92
        %p712 = pneg %p89
        %p713 = scmp.lt.s32.totalorder %s38, 1
        %s714 = scalar_select %p713, %s38, 1
        %s715 = smul.addr %s714, 16
        %s716 = smul.addr %s715, 4
        %s717 = scalar_lea.vmem %s2, %s716
        %p718 = pneg %p118
        %p719 = pneg %p115
        %p720 = scmp.lt.s32.totalorder %s38, 1
        %s721 = scalar_select %p720, %s38, 1
        %s722 = smul.addr %s721, 16
        %s723 = smul.addr %s722, 4
        %s724 = scalar_lea.vmem %s3, %s723
        %p725 = pneg %p144
        %p726 = pneg %p141
        %p727 = scmp.lt.s32.totalorder %s38, 1
        %s728 = scalar_select %p727, %s38, 1
        %s729 = smul.addr %s728, 4
        %s730 = scalar_lea.vmem %s4, %s729
        %p731 = pneg %p170
        %p732 = pneg %p167
        %p733 = scmp.lt.s32.totalorder %s38, 1
        %s734 = scalar_select %p733, %s38, 1
        %s735 = smul.addr %s734, 4
        %s736 = scalar_lea.vmem %s5, %s735
        %p737 = pneg %p196
        %p738 = pneg %p193
        %p739 = scmp.lt.s32.totalorder %s38, 1
        %s740 = scalar_select %p739, %s38, 1
        %s741 = smul.addr %s740, 4
        %s742 = scalar_lea.vmem %s6, %s741
        %p743 = pneg %p222
        %p744 = pneg %p219
        %p745 = scmp.lt.s32.totalorder %s38, 1
        %s746 = scalar_select %p745, %s38, 1
        %s747 = smul.addr %s746, 4
        %s748 = smul.addr %s747, 4
        %s749 = scalar_lea.vmem %s7, %s748
        %p750 = pneg %p248
        %p751 = pneg %p245
        %p752 = scmp.lt.s32.totalorder %s38, 1
        %s753 = scalar_select %p752, %s38, 1
        %s754 = scalar_lea.vmem %s8, %s753
        %p755 = pneg %p274
        %p756 = pneg %p271
        %p757 = scmp.lt.s32.totalorder %s38, 1
        %s758 = scalar_select %p757, %s38, 1
        %s759 = scalar_lea.vmem %s9, %s758
        %p760 = pneg %p300
        %p761 = pneg %p297
        %p762 = scmp.lt.s32.totalorder %s38, 1
        %s763 = scalar_select %p762, %s38, 1
        %s764 = scalar_lea.vmem %s10, %s763
        %p765 = pneg %p326
        %p766 = pneg %p323
        %p767 = scmp.lt.s32.totalorder %s38, 1
        %s768 = scalar_select %p767, %s38, 1
        %s769 = smul.addr %s768, 4
        %s770 = smul.addr %s769, 4
        %s771 = scalar_lea.vmem %s11, %s770
        %p772 = pneg %p352
        %p773 = pneg %p349
        %p774 = scmp.lt.s32.totalorder %s38, 1
        %s775 = scalar_select %p774, %s38, 1
        %s776 = scalar_lea.vmem %s12, %s775
        %p777 = pneg %p378
        %p778 = pneg %p375
        %p779 = scmp.lt.s32.totalorder %s38, 1
        %s780 = scalar_select %p779, %s38, 1
        %s781 = smul.addr %s780, 8
        %s782 = smul.addr %s781, 4
        %s783 = scalar_lea.vmem %s13, %s782
        %p784 = pneg %p404
        %p785 = pneg %p401
        %p786 = scmp.lt.s32.totalorder %s38, 1
        %s787 = scalar_select %p786, %s38, 1
        %s788 = scalar_lea.vmem %s14, %s787
        %p789 = pneg %p430
        %p790 = pneg %p427
        %p791 = scmp.lt.s32.totalorder %s38, 1
        %s792 = scalar_select %p791, %s38, 1
        %s793 = scalar_lea.vmem %s15, %s792
        %p794 = pneg %p456
        %p795 = pneg %p453
        %p796 = scmp.lt.s32.totalorder %s38, 1
        %s797 = scalar_select %p796, %s38, 1
        %s798 = scalar_lea.vmem %s16, %s797
        %p799 = pneg %p482
        %p800 = pneg %p479
        %p801 = pneg %p503
        %p802 = pneg %p500
        %p803 = pneg %p524
        %p804 = pneg %p521
        %p805 = pneg %p550
        %p806 = pneg %p547
        %s807 = sand.u32 %s537, 1
        %s808 = scalar_lea.sflag [#allocation4], %s807
        %s809 = sand.u32 %s537, 1
        %s810 = scalar_lea.vmem [#allocation3], %s809
        %p811 = scmp.lt.s32.totalorder %s37, 1
        %s812 = scalar_select %p811, %s37, 1
        %s813 = smul.addr %s812, 4
        %s814 = scalar_lea.vmem %s0, %s813
        %p815 = scmp.lt.s32.totalorder %s38, 1
        %s816 = scalar_select %p815, %s38, 1
        %s817 = smul.addr %s816, 16
        %s818 = smul.addr %s817, 4
        %s819 = scalar_lea.vmem %s1, %s818
        %p820 = scmp.lt.s32.totalorder %s38, 1
        %s821 = scalar_select %p820, %s38, 1
        %s822 = smul.addr %s821, 16
        %s823 = smul.addr %s822, 4
        %s824 = scalar_lea.vmem %s2, %s823
        %p825 = scmp.lt.s32.totalorder %s38, 1
        %s826 = scalar_select %p825, %s38, 1
        %s827 = smul.addr %s826, 16
        %s828 = smul.addr %s827, 4
        %s829 = scalar_lea.vmem %s3, %s828
        %p830 = scmp.lt.s32.totalorder %s38, 1
        %s831 = scalar_select %p830, %s38, 1
        %s832 = smul.addr %s831, 4
        %s833 = scalar_lea.vmem %s4, %s832
        %p834 = scmp.lt.s32.totalorder %s38, 1
        %s835 = scalar_select %p834, %s38, 1
        %s836 = smul.addr %s835, 4
        %s837 = scalar_lea.vmem %s5, %s836
        %p838 = scmp.lt.s32.totalorder %s38, 1
        %s839 = scalar_select %p838, %s38, 1
        %s840 = smul.addr %s839, 4
        %s841 = scalar_lea.vmem %s6, %s840
        %p842 = scmp.lt.s32.totalorder %s38, 1
        %s843 = scalar_select %p842, %s38, 1
        %s844 = smul.addr %s843, 4
        %s845 = smul.addr %s844, 4
        %s846 = scalar_lea.vmem %s7, %s845
        %p847 = scmp.lt.s32.totalorder %s38, 1
        %s848 = scalar_select %p847, %s38, 1
        %s849 = scalar_lea.vmem %s8, %s848
        %p850 = scmp.lt.s32.totalorder %s38, 1
        %s851 = scalar_select %p850, %s38, 1
        %s852 = scalar_lea.vmem %s9, %s851
        %p853 = scmp.lt.s32.totalorder %s38, 1
        %s854 = scalar_select %p853, %s38, 1
        %s855 = scalar_lea.vmem %s10, %s854
        %p856 = scmp.lt.s32.totalorder %s38, 1
        %s857 = scalar_select %p856, %s38, 1
        %s858 = smul.addr %s857, 4
        %s859 = smul.addr %s858, 4
        %s860 = scalar_lea.vmem %s11, %s859
        %p861 = scmp.lt.s32.totalorder %s38, 1
        %s862 = scalar_select %p861, %s38, 1
        %s863 = scalar_lea.vmem %s12, %s862
        %p864 = scmp.lt.s32.totalorder %s38, 1
        %s865 = scalar_select %p864, %s38, 1
        %s866 = smul.addr %s865, 8
        %s867 = smul.addr %s866, 4
        %s868 = scalar_lea.vmem %s13, %s867
        %p869 = scmp.lt.s32.totalorder %s38, 1
        %s870 = scalar_select %p869, %s38, 1
        %s871 = scalar_lea.vmem %s14, %s870
        %p872 = scmp.lt.s32.totalorder %s38, 1
        %s873 = scalar_select %p872, %s38, 1
        %s874 = scalar_lea.vmem %s15, %s873
        %p875 = scmp.lt.s32.totalorder %s38, 1
        %s876 = scalar_select %p875, %s38, 1
        %s877 = scalar_lea.vmem %s16, %s876
        %p879 = scmp.eq.s32.totalorder %s38, 0
        // Predicated region
        $region97: #{face_emotion_transformer.1} parent=95 // pred_check
          %p880 = pneg %p879
        $region98: #{face_emotion_transformer.1} parent=95 // pred_check_branch
          %882 = sbr.rel (%p880) target = $region100
        $region99: #{face_emotion_transformer.1} parent=95 // pred_region
          %v883 = vld [vmem:[%s814] sm:$0xf]
          %vm884 = vcmask 257024
          %885 = vst.msk [vmem:[#allocation2] sm:$0xf] %vm884, %v883
        $region100: #{face_emotion_transformer.1} parent=95 // pred_fallthru
          _
        %v886 = vld [vmem:[#allocation2] sm:$0xf]
        %v887 = vunpack.c.l.bf16 %v886
        %v888 = vld [vmem:[%s819] sm:$0xf]
        %v889 = vld [vmem:[%s819 + $0x4] sm:$0xf]
        %v890 = vld [vmem:[%s819 + $0x8] sm:$0xf]
        %v891 = vld [vmem:[%s819 + $0xc] sm:$0xf]
        %v892 = vld [vmem:[%s833] sm:$0x1]
        %v894 = vperm.slane %v892, 0
        %v900 = vunpack.c.l.b16 %v888
        %v901 = vunpack.c.l.b16 %v889
        %v902 = vunpack.c.l.b16 %v890
        %v903 = vunpack.c.l.b16 %v891
        %v904 = vpack.c.b16 %v901, %v900
        %v905 = vpack.c.b16 %v903, %v902
        %vm908 = vcmask 261120
        %v910 = vsel %vm908, %v886, 0
        %912 = vmatpush.bf16.msra.mxu0 0
        %913 = vmatpush.bf16.msra.mxu0 0
        %914 = vmatpush.bf16.msra.mxu0 0
        %915 = vmatpush.bf16.msra.mxu0 0
        %916 = vmatpush.bf16.msra.mxu0 0
        %917 = vmatpush.bf16.msra.mxu0 0
        %918 = vmatpush.bf16.msra.mxu0 %v905
        %919 = vmatpush.bf16.msra.mxu0 %v904
        %920 = vmatmul.bf16.gmra.mxu0 %v910
        %v921 = vpop.f32.mrf.mxu0
        %v922 = vadd.f32 %v894, %v921
        %v923 = vpop.f32.mrf.mxu0
        %924 = vdwg.mxu0
        %v925 = vld [vmem:[%s824] sm:$0xf]
        %v926 = vld [vmem:[%s824 + $0x4] sm:$0xf]
        %v927 = vld [vmem:[%s824 + $0x8] sm:$0xf]
        %v928 = vld [vmem:[%s824 + $0xc] sm:$0xf]
        %v929 = vld [vmem:[%s837] sm:$0x1]
        %v931 = vperm.slane %v929, 0
        %v937 = vunpack.c.l.b16 %v925
        %v938 = vunpack.c.l.b16 %v926
        %v939 = vunpack.c.l.b16 %v927
        %v940 = vunpack.c.l.b16 %v928
        %v941 = vpack.c.b16 %v938, %v937
        %v942 = vpack.c.b16 %v940, %v939
        %945 = vmatpush.bf16.msra.mxu0 0
        %946 = vmatpush.bf16.msra.mxu0 0
        %947 = vmatpush.bf16.msra.mxu0 0
        %948 = vmatpush.bf16.msra.mxu0 0
        %949 = vmatpush.bf16.msra.mxu0 0
        %950 = vmatpush.bf16.msra.mxu0 0
        %951 = vmatpush.bf16.msra.mxu0 %v942
        %952 = vmatpush.bf16.msra.mxu0 %v941
        %953 = vmatmul.bf16.gmra.mxu0 %v910
        %v954 = vpop.f32.mrf.mxu0
        %v955 = vadd.f32 %v931, %v954
        %v956 = vpop.f32.mrf.mxu0
        %957 = vdwg.mxu0
        %v958 = vld [vmem:[%s829] sm:$0xf]
        %v959 = vld [vmem:[%s829 + $0x4] sm:$0xf]
        %v960 = vld [vmem:[%s829 + $0x8] sm:$0xf]
        %v961 = vld [vmem:[%s829 + $0xc] sm:$0xf]
        %v962 = vld [vmem:[%s841] sm:$0x1]
        %v964 = vperm.slane %v962, 0
        %v970 = vunpack.c.l.b16 %v958
        %v971 = vunpack.c.l.b16 %v959
        %v972 = vunpack.c.l.b16 %v960
        %v973 = vunpack.c.l.b16 %v961
        %v974 = vpack.c.b16 %v971, %v970
        %v975 = vpack.c.b16 %v973, %v972
        %978 = vmatpush.bf16.msra.mxu0 0
        %979 = vmatpush.bf16.msra.mxu0 0
        %980 = vmatpush.bf16.msra.mxu0 0
        %981 = vmatpush.bf16.msra.mxu0 0
        %982 = vmatpush.bf16.msra.mxu0 0
        %983 = vmatpush.bf16.msra.mxu0 0
        %984 = vmatpush.bf16.msra.mxu0 %v975
        %985 = vmatpush.bf16.msra.mxu0 %v974
        %986 = vmatmul.bf16.gmra.mxu0 %v910
        %v987 = vpop.f32.mrf.mxu0
        %v988 = vadd.f32 %v964, %v987
        %v989 = vpop.f32.mrf.mxu0
        %990 = vdwg.mxu0
        %v991 = vpack.c.bf16 %v922, %v922
        %v992 = vpack.c.bf16 %v955, %v955
        %vm993 = vcmask 64512
        %v995 = vsel %vm993, %v991, 0
        %v998 = vsel %vm993, %v992, 0
        %1000 = vmatpush.bf16.xpose.msra.mxu0 0
        %1001 = vmatpush.bf16.xpose.msra.mxu0 0
        %1002 = vmatpush.bf16.xpose.msra.mxu0 0
        %1003 = vmatpush.bf16.xpose.msra.mxu0 0
        %1004 = vmatpush.bf16.xpose.msra.mxu0 0
        %1005 = vmatpush.bf16.xpose.msra.mxu0 0
        %1006 = vmatpush.bf16.xpose.msra.mxu0 0
        %1007 = vmatpush.bf16.xpose.msra.mxu0 %v998
        %1008 = vmatmul.bf16.gmra.mxu0 %v995
        %v1009 = vpop.f32.mrf.mxu0
        %v1010 = vadd.f32 0.0, %v1009
        %v1011 = vpop.f32.mrf.mxu0
        %1012 = vdwg.mxu0
        %v1013 = vsel %vm993, %v1010, -inf
        %1014 = vmax.xlane.f32.xlu0 %v1013
        %v1015 = vpop.xlane.xlu0 %1014
        %v1016 = vsub.f32 %v1010, %v1015
        %v1017 = vmul.f32 %v1016, 1.442695
        %v1018 = vpow.pop %v1017
        %v1019 = vsel %vm993, %v1018, 0.0
        %1020 = vadd.xlane.f32.xlu0 %v1019
        %v1021 = vpop.xlane.xlu0 %1020
        %v1022 = vrcp.pop %v1021
        %v1023 = vmul.f32 %v1018, %v1022
        %v1024 = vpack.c.bf16 %v1023, %v1023
        %v1025 = vpack.c.bf16 %v988, %v988
        %v1027 = vsel %vm993, %v1024, 0
        %vm1029 = vcmask 1043456
        %v1031 = vsel %vm1029, %v1025, 0
        %1033 = vmatpush.bf16.msra.mxu0 0
        %1034 = vmatpush.bf16.msra.mxu0 0
        %1035 = vmatpush.bf16.msra.mxu0 0
        %1036 = vmatpush.bf16.msra.mxu0 0
        %1037 = vmatpush.bf16.msra.mxu0 0
        %1038 = vmatpush.bf16.msra.mxu0 0
        %1039 = vmatpush.bf16.msra.mxu0 0
        %1040 = vmatpush.bf16.msra.mxu0 %v1031
        %1041 = vmatmul.bf16.gmra.mxu0 %v1027
        %v1042 = vpop.f32.mrf.mxu0
        %v1043 = vadd.f32 0.0, %v1042
        %v1044 = vpop.f32.mrf.mxu0
        %1045 = vdwg.mxu0
        %s1046 = scalar_lea.vmem %s819, 16
        %v1047 = vld [vmem:[%s1046] sm:$0xf]
        %v1048 = vld [vmem:[%s1046 + $0x4] sm:$0xf]
        %v1049 = vld [vmem:[%s1046 + $0x8] sm:$0xf]
        %v1050 = vld [vmem:[%s1046 + $0xc] sm:$0xf]
        %s1051 = scalar_lea.vmem %s833, 1
        %v1052 = vld [vmem:[%s1051] sm:$0x1]
        %v1054 = vperm.slane %v1052, 0
        %v1060 = vunpack.c.l.b16 %v1047
        %v1061 = vunpack.c.l.b16 %v1048
        %v1062 = vunpack.c.l.b16 %v1049
        %v1063 = vunpack.c.l.b16 %v1050
        %v1064 = vpack.c.b16 %v1061, %v1060
        %v1065 = vpack.c.b16 %v1063, %v1062
        %1068 = vmatpush.bf16.msra.mxu0 0
        %1069 = vmatpush.bf16.msra.mxu0 0
        %1070 = vmatpush.bf16.msra.mxu0 0
        %1071 = vmatpush.bf16.msra.mxu0 0
        %1072 = vmatpush.bf16.msra.mxu0 0
        %1073 = vmatpush.bf16.msra.mxu0 0
        %1074 = vmatpush.bf16.msra.mxu0 %v1065
        %1075 = vmatpush.bf16.msra.mxu0 %v1064
        %1076 = vmatmul.bf16.gmra.mxu0 %v910
        %v1077 = vpop.f32.mrf.mxu0
        %v1078 = vadd.f32 %v1054, %v1077
        %v1079 = vpop.f32.mrf.mxu0
        %1080 = vdwg.mxu0
        %s1081 = scalar_lea.vmem %s824, 16
        %v1082 = vld [vmem:[%s1081] sm:$0xf]
        %v1083 = vld [vmem:[%s1081 + $0x4] sm:$0xf]
        %v1084 = vld [vmem:[%s1081 + $0x8] sm:$0xf]
        %v1085 = vld [vmem:[%s1081 + $0xc] sm:$0xf]
        %s1086 = scalar_lea.vmem %s837, 1
        %v1087 = vld [vmem:[%s1086] sm:$0x1]
        %v1089 = vperm.slane %v1087, 0
        %v1095 = vunpack.c.l.b16 %v1082
        %v1096 = vunpack.c.l.b16 %v1083
        %v1097 = vunpack.c.l.b16 %v1084
        %v1098 = vunpack.c.l.b16 %v1085
        %v1099 = vpack.c.b16 %v1096, %v1095
        %v1100 = vpack.c.b16 %v1098, %v1097
        %1103 = vmatpush.bf16.msra.mxu0 0
        %1104 = vmatpush.bf16.msra.mxu0 0
        %1105 = vmatpush.bf16.msra.mxu0 0
        %1106 = vmatpush.bf16.msra.mxu0 0
        %1107 = vmatpush.bf16.msra.mxu0 0
        %1108 = vmatpush.bf16.msra.mxu0 0
        %1109 = vmatpush.bf16.msra.mxu0 %v1100
        %1110 = vmatpush.bf16.msra.mxu0 %v1099
        %1111 = vmatmul.bf16.gmra.mxu0 %v910
        %v1112 = vpop.f32.mrf.mxu0
        %v1113 = vadd.f32 %v1089, %v1112
        %v1114 = vpop.f32.mrf.mxu0
        %1115 = vdwg.mxu0
        %s1116 = scalar_lea.vmem %s829, 16
        %v1117 = vld [vmem:[%s1116] sm:$0xf]
        %v1118 = vld [vmem:[%s1116 + $0x4] sm:$0xf]
        %v1119 = vld [vmem:[%s1116 + $0x8] sm:$0xf]
        %v1120 = vld [vmem:[%s1116 + $0xc] sm:$0xf]
        %s1121 = scalar_lea.vmem %s841, 1
        %v1122 = vld [vmem:[%s1121] sm:$0x1]
        %v1124 = vperm.slane %v1122, 0
        %v1130 = vunpack.c.l.b16 %v1117
        %v1131 = vunpack.c.l.b16 %v1118
        %v1132 = vunpack.c.l.b16 %v1119
        %v1133 = vunpack.c.l.b16 %v1120
        %v1134 = vpack.c.b16 %v1131, %v1130
        %v1135 = vpack.c.b16 %v1133, %v1132
        %1138 = vmatpush.bf16.msra.mxu0 0
        %1139 = vmatpush.bf16.msra.mxu0 0
        %1140 = vmatpush.bf16.msra.mxu0 0
        %1141 = vmatpush.bf16.msra.mxu0 0
        %1142 = vmatpush.bf16.msra.mxu0 0
        %1143 = vmatpush.bf16.msra.mxu0 0
        %1144 = vmatpush.bf16.msra.mxu0 %v1135
        %1145 = vmatpush.bf16.msra.mxu0 %v1134
        %1146 = vmatmul.bf16.gmra.mxu0 %v910
        %v1147 = vpop.f32.mrf.mxu0
        %v1148 = vadd.f32 %v1124, %v1147
        %v1149 = vpop.f32.mrf.mxu0
        %1150 = vdwg.mxu0
        %v1151 = vpack.c.bf16 %v1078, %v1078
        %v1152 = vpack.c.bf16 %v1113, %v1113
        %v1154 = vsel %vm993, %v1151, 0
        %v1157 = vsel %vm993, %v1152, 0
        %1159 = vmatpush.bf16.xpose.msra.mxu0 0
        %1160 = vmatpush.bf16.xpose.msra.mxu0 0
        %1161 = vmatpush.bf16.xpose.msra.mxu0 0
        %1162 = vmatpush.bf16.xpose.msra.mxu0 0
        %1163 = vmatpush.bf16.xpose.msra.mxu0 0
        %1164 = vmatpush.bf16.xpose.msra.mxu0 0
        %1165 = vmatpush.bf16.xpose.msra.mxu0 0
        %1166 = vmatpush.bf16.xpose.msra.mxu0 %v1157
        %1167 = vmatmul.bf16.gmra.mxu0 %v1154
        %v1168 = vpop.f32.mrf.mxu0
        %v1169 = vadd.f32 0.0, %v1168
        %v1170 = vpop.f32.mrf.mxu0
        %1171 = vdwg.mxu0
        %v1172 = vsel %vm993, %v1169, -inf
        %1173 = vmax.xlane.f32.xlu0 %v1172
        %v1174 = vpop.xlane.xlu0 %1173
        %v1175 = vsub.f32 %v1169, %v1174
        %v1176 = vmul.f32 %v1175, 1.442695
        %v1177 = vpow.pop %v1176
        %v1178 = vsel %vm993, %v1177, 0.0
        %1179 = vadd.xlane.f32.xlu0 %v1178
        %v1180 = vpop.xlane.xlu0 %1179
        %v1181 = vrcp.pop %v1180
        %v1182 = vmul.f32 %v1177, %v1181
        %v1183 = vpack.c.bf16 %v1182, %v1182
        %v1184 = vpack.c.bf16 %v1148, %v1148
        %v1186 = vsel %vm993, %v1183, 0
        %v1189 = vsel %vm1029, %v1184, 0
        %1191 = vmatpush.bf16.msra.mxu0 0
        %1192 = vmatpush.bf16.msra.mxu0 0
        %1193 = vmatpush.bf16.msra.mxu0 0
        %1194 = vmatpush.bf16.msra.mxu0 0
        %1195 = vmatpush.bf16.msra.mxu0 0
        %1196 = vmatpush.bf16.msra.mxu0 0
        %1197 = vmatpush.bf16.msra.mxu0 0
        %1198 = vmatpush.bf16.msra.mxu0 %v1189
        %1199 = vmatmul.bf16.gmra.mxu0 %v1186
        %v1200 = vpop.f32.mrf.mxu0
        %v1201 = vadd.f32 0.0, %v1200
        %v1202 = vpop.f32.mrf.mxu0
        %1203 = vdwg.mxu0
        %s1204 = scalar_lea.vmem %s819, 32
        %v1205 = vld [vmem:[%s1204] sm:$0xf]
        %v1206 = vld [vmem:[%s1204 + $0x4] sm:$0xf]
        %v1207 = vld [vmem:[%s1204 + $0x8] sm:$0xf]
        %v1208 = vld [vmem:[%s1204 + $0xc] sm:$0xf]
        %s1209 = scalar_lea.vmem %s833, 2
        %v1210 = vld [vmem:[%s1209] sm:$0x1]
        %v1212 = vperm.slane %v1210, 0
        %v1218 = vunpack.c.l.b16 %v1205
        %v1219 = vunpack.c.l.b16 %v1206
        %v1220 = vunpack.c.l.b16 %v1207
        %v1221 = vunpack.c.l.b16 %v1208
        %v1222 = vpack.c.b16 %v1219, %v1218
        %v1223 = vpack.c.b16 %v1221, %v1220
        %1226 = vmatpush.bf16.msra.mxu0 0
        %1227 = vmatpush.bf16.msra.mxu0 0
        %1228 = vmatpush.bf16.msra.mxu0 0
        %1229 = vmatpush.bf16.msra.mxu0 0
        %1230 = vmatpush.bf16.msra.mxu0 0
        %1231 = vmatpush.bf16.msra.mxu0 0
        %1232 = vmatpush.bf16.msra.mxu0 %v1223
        %1233 = vmatpush.bf16.msra.mxu0 %v1222
        %1234 = vmatmul.bf16.gmra.mxu0 %v910
        %v1235 = vpop.f32.mrf.mxu0
        %v1236 = vadd.f32 %v1212, %v1235
        %v1237 = vpop.f32.mrf.mxu0
        %1238 = vdwg.mxu0
        %s1239 = scalar_lea.vmem %s824, 32
        %v1240 = vld [vmem:[%s1239] sm:$0xf]
        %v1241 = vld [vmem:[%s1239 + $0x4] sm:$0xf]
        %v1242 = vld [vmem:[%s1239 + $0x8] sm:$0xf]
        %v1243 = vld [vmem:[%s1239 + $0xc] sm:$0xf]
        %s1244 = scalar_lea.vmem %s837, 2
        %v1245 = vld [vmem:[%s1244] sm:$0x1]
        %v1247 = vperm.slane %v1245, 0
        %v1253 = vunpack.c.l.b16 %v1240
        %v1254 = vunpack.c.l.b16 %v1241
        %v1255 = vunpack.c.l.b16 %v1242
        %v1256 = vunpack.c.l.b16 %v1243
        %v1257 = vpack.c.b16 %v1254, %v1253
        %v1258 = vpack.c.b16 %v1256, %v1255
        %1261 = vmatpush.bf16.msra.mxu0 0
        %1262 = vmatpush.bf16.msra.mxu0 0
        %1263 = vmatpush.bf16.msra.mxu0 0
        %1264 = vmatpush.bf16.msra.mxu0 0
        %1265 = vmatpush.bf16.msra.mxu0 0
        %1266 = vmatpush.bf16.msra.mxu0 0
        %1267 = vmatpush.bf16.msra.mxu0 %v1258
        %1268 = vmatpush.bf16.msra.mxu0 %v1257
        %1269 = vmatmul.bf16.gmra.mxu0 %v910
        %v1270 = vpop.f32.mrf.mxu0
        %v1271 = vadd.f32 %v1247, %v1270
        %v1272 = vpop.f32.mrf.mxu0
        %1273 = vdwg.mxu0
        %s1274 = scalar_lea.vmem %s829, 32
        %v1275 = vld [vmem:[%s1274] sm:$0xf]
        %v1276 = vld [vmem:[%s1274 + $0x4] sm:$0xf]
        %v1277 = vld [vmem:[%s1274 + $0x8] sm:$0xf]
        %v1278 = vld [vmem:[%s1274 + $0xc] sm:$0xf]
        %s1279 = scalar_lea.vmem %s841, 2
        %v1280 = vld [vmem:[%s1279] sm:$0x1]
        %v1282 = vperm.slane %v1280, 0
        %v1288 = vunpack.c.l.b16 %v1275
        %v1289 = vunpack.c.l.b16 %v1276
        %v1290 = vunpack.c.l.b16 %v1277
        %v1291 = vunpack.c.l.b16 %v1278
        %v1292 = vpack.c.b16 %v1289, %v1288
        %v1293 = vpack.c.b16 %v1291, %v1290
        %1296 = vmatpush.bf16.msra.mxu0 0
        %1297 = vmatpush.bf16.msra.mxu0 0
        %1298 = vmatpush.bf16.msra.mxu0 0
        %1299 = vmatpush.bf16.msra.mxu0 0
        %1300 = vmatpush.bf16.msra.mxu0 0
        %1301 = vmatpush.bf16.msra.mxu0 0
        %1302 = vmatpush.bf16.msra.mxu0 %v1293
        %1303 = vmatpush.bf16.msra.mxu0 %v1292
        %1304 = vmatmul.bf16.gmra.mxu0 %v910
        %v1305 = vpop.f32.mrf.mxu0
        %v1306 = vadd.f32 %v1282, %v1305
        %v1307 = vpop.f32.mrf.mxu0
        %1308 = vdwg.mxu0
        %v1309 = vpack.c.bf16 %v1236, %v1236
        %v1310 = vpack.c.bf16 %v1271, %v1271
        %v1312 = vsel %vm993, %v1309, 0
        %v1315 = vsel %vm993, %v1310, 0
        %1317 = vmatpush.bf16.xpose.msra.mxu0 0
        %1318 = vmatpush.bf16.xpose.msra.mxu0 0
        %1319 = vmatpush.bf16.xpose.msra.mxu0 0
        %1320 = vmatpush.bf16.xpose.msra.mxu0 0
        %1321 = vmatpush.bf16.xpose.msra.mxu0 0
        %1322 = vmatpush.bf16.xpose.msra.mxu0 0
        %1323 = vmatpush.bf16.xpose.msra.mxu0 0
        %1324 = vmatpush.bf16.xpose.msra.mxu0 %v1315
        %1325 = vmatmul.bf16.gmra.mxu0 %v1312
        %v1326 = vpop.f32.mrf.mxu0
        %v1327 = vadd.f32 0.0, %v1326
        %v1328 = vpop.f32.mrf.mxu0
        %1329 = vdwg.mxu0
        %v1330 = vsel %vm993, %v1327, -inf
        %1331 = vmax.xlane.f32.xlu0 %v1330
        %v1332 = vpop.xlane.xlu0 %1331
        %v1333 = vsub.f32 %v1327, %v1332
        %v1334 = vmul.f32 %v1333, 1.442695
        %v1335 = vpow.pop %v1334
        %v1336 = vsel %vm993, %v1335, 0.0
        %1337 = vadd.xlane.f32.xlu0 %v1336
        %v1338 = vpop.xlane.xlu0 %1337
        %v1339 = vrcp.pop %v1338
        %v1340 = vmul.f32 %v1335, %v1339
        %v1341 = vpack.c.bf16 %v1340, %v1340
        %v1342 = vpack.c.bf16 %v1306, %v1306
        %v1344 = vsel %vm993, %v1341, 0
        %v1347 = vsel %vm1029, %v1342, 0
        %1349 = vmatpush.bf16.msra.mxu0 0
        %1350 = vmatpush.bf16.msra.mxu0 0
        %1351 = vmatpush.bf16.msra.mxu0 0
        %1352 = vmatpush.bf16.msra.mxu0 0
        %1353 = vmatpush.bf16.msra.mxu0 0
        %1354 = vmatpush.bf16.msra.mxu0 0
        %1355 = vmatpush.bf16.msra.mxu0 0
        %1356 = vmatpush.bf16.msra.mxu0 %v1347
        %1357 = vmatmul.bf16.gmra.mxu0 %v1344
        %v1358 = vpop.f32.mrf.mxu0
        %v1359 = vadd.f32 0.0, %v1358
        %v1360 = vpop.f32.mrf.mxu0
        %1361 = vdwg.mxu0
        %s1362 = scalar_lea.vmem %s819, 48
        %v1363 = vld [vmem:[%s1362] sm:$0xf]
        %v1364 = vld [vmem:[%s1362 + $0x4] sm:$0xf]
        %v1365 = vld [vmem:[%s1362 + $0x8] sm:$0xf]
        %v1366 = vld [vmem:[%s1362 + $0xc] sm:$0xf]
        %s1367 = scalar_lea.vmem %s833, 3
        %v1368 = vld [vmem:[%s1367] sm:$0x1]
        %v1370 = vperm.slane %v1368, 0
        %v1376 = vunpack.c.l.b16 %v1363
        %v1377 = vunpack.c.l.b16 %v1364
        %v1378 = vunpack.c.l.b16 %v1365
        %v1379 = vunpack.c.l.b16 %v1366
        %v1380 = vpack.c.b16 %v1377, %v1376
        %v1381 = vpack.c.b16 %v1379, %v1378
        %1384 = vmatpush.bf16.msra.mxu0 0
        %1385 = vmatpush.bf16.msra.mxu0 0
        %1386 = vmatpush.bf16.msra.mxu0 0
        %1387 = vmatpush.bf16.msra.mxu0 0
        %1388 = vmatpush.bf16.msra.mxu0 0
        %1389 = vmatpush.bf16.msra.mxu0 0
        %1390 = vmatpush.bf16.msra.mxu0 %v1381
        %1391 = vmatpush.bf16.msra.mxu0 %v1380
        %1392 = vmatmul.bf16.gmra.mxu0 %v910
        %v1393 = vpop.f32.mrf.mxu0
        %v1394 = vadd.f32 %v1370, %v1393
        %v1395 = vpop.f32.mrf.mxu0
        %1396 = vdwg.mxu0
        %s1397 = scalar_lea.vmem %s824, 48
        %v1398 = vld [vmem:[%s1397] sm:$0xf]
        %v1399 = vld [vmem:[%s1397 + $0x4] sm:$0xf]
        %v1400 = vld [vmem:[%s1397 + $0x8] sm:$0xf]
        %v1401 = vld [vmem:[%s1397 + $0xc] sm:$0xf]
        %s1402 = scalar_lea.vmem %s837, 3
        %v1403 = vld [vmem:[%s1402] sm:$0x1]
        %v1405 = vperm.slane %v1403, 0
        %v1411 = vunpack.c.l.b16 %v1398
        %v1412 = vunpack.c.l.b16 %v1399
        %v1413 = vunpack.c.l.b16 %v1400
        %v1414 = vunpack.c.l.b16 %v1401
        %v1415 = vpack.c.b16 %v1412, %v1411
        %v1416 = vpack.c.b16 %v1414, %v1413
        %1419 = vmatpush.bf16.msra.mxu0 0
        %1420 = vmatpush.bf16.msra.mxu0 0
        %1421 = vmatpush.bf16.msra.mxu0 0
        %1422 = vmatpush.bf16.msra.mxu0 0
        %1423 = vmatpush.bf16.msra.mxu0 0
        %1424 = vmatpush.bf16.msra.mxu0 0
        %1425 = vmatpush.bf16.msra.mxu0 %v1416
        %1426 = vmatpush.bf16.msra.mxu0 %v1415
        %1427 = vmatmul.bf16.gmra.mxu0 %v910
        %v1428 = vpop.f32.mrf.mxu0
        %v1429 = vadd.f32 %v1405, %v1428
        %v1430 = vpop.f32.mrf.mxu0
        %1431 = vdwg.mxu0
        %s1432 = scalar_lea.vmem %s829, 48
        %v1433 = vld [vmem:[%s1432] sm:$0xf]
        %v1434 = vld [vmem:[%s1432 + $0x4] sm:$0xf]
        %v1435 = vld [vmem:[%s1432 + $0x8] sm:$0xf]
        %v1436 = vld [vmem:[%s1432 + $0xc] sm:$0xf]
        %s1437 = scalar_lea.vmem %s841, 3
        %v1438 = vld [vmem:[%s1437] sm:$0x1]
        %v1440 = vperm.slane %v1438, 0
        %v1446 = vunpack.c.l.b16 %v1433
        %v1447 = vunpack.c.l.b16 %v1434
        %v1448 = vunpack.c.l.b16 %v1435
        %v1449 = vunpack.c.l.b16 %v1436
        %v1450 = vpack.c.b16 %v1447, %v1446
        %v1451 = vpack.c.b16 %v1449, %v1448
        %1454 = vmatpush.bf16.msra.mxu0 0
        %1455 = vmatpush.bf16.msra.mxu0 0
        %1456 = vmatpush.bf16.msra.mxu0 0
        %1457 = vmatpush.bf16.msra.mxu0 0
        %1458 = vmatpush.bf16.msra.mxu0 0
        %1459 = vmatpush.bf16.msra.mxu0 0
        %1460 = vmatpush.bf16.msra.mxu0 %v1451
        %1461 = vmatpush.bf16.msra.mxu0 %v1450
        %1462 = vmatmul.bf16.gmra.mxu0 %v910
        %v1463 = vpop.f32.mrf.mxu0
        %v1464 = vadd.f32 %v1440, %v1463
        %v1465 = vpop.f32.mrf.mxu0
        %1466 = vdwg.mxu0
        %v1467 = vpack.c.bf16 %v1394, %v1394
        %v1468 = vpack.c.bf16 %v1429, %v1429
        %v1470 = vsel %vm993, %v1467, 0
        %v1473 = vsel %vm993, %v1468, 0
        %1475 = vmatpush.bf16.xpose.msra.mxu0 0
        %1476 = vmatpush.bf16.xpose.msra.mxu0 0
        %1477 = vmatpush.bf16.xpose.msra.mxu0 0
        %1478 = vmatpush.bf16.xpose.msra.mxu0 0
        %1479 = vmatpush.bf16.xpose.msra.mxu0 0
        %1480 = vmatpush.bf16.xpose.msra.mxu0 0
        %1481 = vmatpush.bf16.xpose.msra.mxu0 0
        %1482 = vmatpush.bf16.xpose.msra.mxu0 %v1473
        %1483 = vmatmul.bf16.gmra.mxu0 %v1470
        %v1484 = vpop.f32.mrf.mxu0
        %v1485 = vadd.f32 0.0, %v1484
        %v1486 = vpop.f32.mrf.mxu0
        %1487 = vdwg.mxu0
        %v1488 = vsel %vm993, %v1485, -inf
        %1489 = vmax.xlane.f32.xlu0 %v1488
        %v1490 = vpop.xlane.xlu0 %1489
        %v1491 = vsub.f32 %v1485, %v1490
        %v1492 = vmul.f32 %v1491, 1.442695
        %v1493 = vpow.pop %v1492
        %v1494 = vsel %vm993, %v1493, 0.0
        %1495 = vadd.xlane.f32.xlu0 %v1494
        %v1496 = vpop.xlane.xlu0 %1495
        %v1497 = vrcp.pop %v1496
        %v1498 = vmul.f32 %v1493, %v1497
        %v1499 = vpack.c.bf16 %v1498, %v1498
        %v1500 = vpack.c.bf16 %v1464, %v1464
        %v1502 = vsel %vm993, %v1499, 0
        %v1505 = vsel %vm1029, %v1500, 0
        %1507 = vmatpush.bf16.msra.mxu0 0
        %1508 = vmatpush.bf16.msra.mxu0 0
        %1509 = vmatpush.bf16.msra.mxu0 0
        %1510 = vmatpush.bf16.msra.mxu0 0
        %1511 = vmatpush.bf16.msra.mxu0 0
        %1512 = vmatpush.bf16.msra.mxu0 0
        %1513 = vmatpush.bf16.msra.mxu0 0
        %1514 = vmatpush.bf16.msra.mxu0 %v1505
        %1515 = vmatmul.bf16.gmra.mxu0 %v1502
        %v1516 = vpop.f32.mrf.mxu0
        %v1517 = vadd.f32 0.0, %v1516
        %v1518 = vpop.f32.mrf.mxu0
        %1519 = vdwg.mxu0
        %1521 = vrot.lane.b32.xlu0 %v1201, 8
        %v1522 = vpop.permute.xlu0 %1521
        %1525 = vrot.lane.b32.xlu0 %v1359, 16
        %v1526 = vpop.permute.xlu0 %1525
        %1529 = vrot.lane.b32.xlu0 %v1517, 24
        %v1530 = vpop.permute.xlu0 %1529
        %v1532 = vsel %vm993, %v1043, %v1522
        %vm1533 = vcmask 130048
        %v1534 = vsel %vm1533, %v1532, %v1526
        %vm1535 = vcmask 195584
        %v1536 = vsel %vm1535, %v1534, %v1530
        %v1537 = vpack.c.bf16 %v1536, %v1536
        %v1538 = vld [vmem:[%s846] sm:$0xf]
        %v1539 = vld [vmem:[%s846 + $0x4] sm:$0xf]
        %v1540 = vld [vmem:[%s846 + $0x8] sm:$0xf]
        %v1541 = vld [vmem:[%s846 + $0xc] sm:$0xf]
        %v1542 = vld [vmem:[%s849] sm:$0x1]
        %v1544 = vperm.slane %v1542, 0
        %v1550 = vunpack.c.l.b16 %v1538
        %v1551 = vunpack.c.l.b16 %v1539
        %v1552 = vunpack.c.l.b16 %v1540
        %v1553 = vunpack.c.l.b16 %v1541
        %v1554 = vpack.c.b16 %v1551, %v1550
        %v1555 = vpack.c.b16 %v1553, %v1552
        %v1559 = vsel %vm908, %v1537, 0
        %1561 = vmatpush.bf16.msra.mxu0 0
        %1562 = vmatpush.bf16.msra.mxu0 0
        %1563 = vmatpush.bf16.msra.mxu0 0
        %1564 = vmatpush.bf16.msra.mxu0 0
        %1565 = vmatpush.bf16.msra.mxu0 0
        %1566 = vmatpush.bf16.msra.mxu0 0
        %1567 = vmatpush.bf16.msra.mxu0 %v1555
        %1568 = vmatpush.bf16.msra.mxu0 %v1554
        %1569 = vmatmul.bf16.gmra.mxu0 %v1559
        %v1570 = vpop.f32.mrf.mxu0
        %v1571 = vadd.f32 %v1544, %v1570
        %v1572 = vpop.f32.mrf.mxu0
        %1573 = vdwg.mxu0
        %v1574 = vadd.f32 %v887, %v1571
        %v1575 = vld [vmem:[%s852] sm:$0x1]
        %v1576 = vld [vmem:[%s855] sm:$0x1]
        %v1577 = vsel %vm908, %v1574, 0.0
        %1578 = vadd.xlane.f32.xlu0 %v1577
        %v1579 = vpop.xlane.xlu0 %1578
        %v1580 = vrcp.pop 32.0
        %v1581 = vmul.f32 32.0, %v1580
        %v1582 = vsub.f32 1.0, %v1581
        %v1583 = vmul.f32 %v1580, %v1582
        %v1584 = vadd.f32 %v1580, %v1583
        %vm1585 = vweird.f32 %v1580
        %v1586 = vsel %vm1585, %v1580, %v1584
        %v1587 = vmul.f32 %v1579, %v1586
        %v1588 = vsub.f32 %v1574, %v1587
        %v1589 = vmul.f32 %v1588, %v1588
        %v1590 = vsel %vm908, %v1589, 0.0
        %1591 = vadd.xlane.f32.xlu0 %v1590
        %v1592 = vpop.xlane.xlu0 %1591
        %v1593 = vmul.f32 %v1592, %v1586
        %v1594 = vadd.f32 %v1593, 1e-05
        %v1595 = vrsqrt.pop %v1594
        %v1596 = vmul.f32 %v1595, %v1594
        %v1597 = vmul.f32 %v1596, %v1595
        %v1598 = vmul.f32 0.5, %v1597
        %v1599 = vsub.f32 1.5, %v1598
        %v1600 = vmul.f32 %v1595, %v1599
        %vm1601 = vweird.f32 %v1594
        %vm1602 = vweird.f32 %v1595
        %vm1603 = vmor %vm1601, %vm1602
        %v1604 = vsel %vm1603, %v1595, %v1600
        %v1605 = vmul.f32 %v1588, %v1604
        %v1607 = vperm.slane %v1575, 0
        %v1609 = vmul.f32 %v1605, %v1607
        %v1611 = vperm.slane %v1576, 0
        %v1613 = vadd.f32 %v1609, %v1611
        %v1614 = vpack.c.bf16 %v1613, %v1613
        %v1615 = vld [vmem:[%s860] sm:$0xf]
        %v1616 = vld [vmem:[%s860 + $0x4] sm:$0xf]
        %v1617 = vld [vmem:[%s860 + $0x8] sm:$0xf]
        %v1618 = vld [vmem:[%s860 + $0xc] sm:$0xf]
        %v1619 = vld [vmem:[%s863] sm:$0x1]
        %v1621 = vperm.slane %v1619, 0
        %v1627 = vunpack.c.l.b16 %v1615
        %v1628 = vunpack.c.l.b16 %v1616
        %v1629 = vunpack.c.l.b16 %v1617
        %v1630 = vunpack.c.l.b16 %v1618
        %v1631 = vpack.c.b16 %v1628, %v1627
        %v1632 = vpack.c.b16 %v1630, %v1629
        %v1636 = vsel %vm908, %v1614, 0
        %1638 = vmatpush.bf16.msra.mxu0 0
        %1639 = vmatpush.bf16.msra.mxu0 0
        %1640 = vmatpush.bf16.msra.mxu0 0
        %1641 = vmatpush.bf16.msra.mxu0 0
        %1642 = vmatpush.bf16.msra.mxu0 0
        %1643 = vmatpush.bf16.msra.mxu0 0
        %1644 = vmatpush.bf16.msra.mxu0 %v1632
        %1645 = vmatpush.bf16.msra.mxu0 %v1631
        %1646 = vmatmul.bf16.gmra.mxu0 %v1636
        %v1647 = vpop.f32.mrf.mxu0
        %v1648 = vadd.f32 %v1621, %v1647
        %v1649 = vpop.f32.mrf.mxu0
        %1650 = vdwg.mxu0
        %v1651 = vmax.f32 %v1648, 0.0
        %v1652 = vpack.c.bf16 %v1651, %v1651
        %v1653 = vld [vmem:[%s868] sm:$0xf]
        %v1654 = vld [vmem:[%s868 + $0x4] sm:$0xf]
        %v1655 = vld [vmem:[%s868 + $0x8] sm:$0xf]
        %v1656 = vld [vmem:[%s868 + $0xc] sm:$0xf]
        %v1657 = vld [vmem:[%s868 + $0x10] sm:$0xf]
        %v1658 = vld [vmem:[%s868 + $0x14] sm:$0xf]
        %v1659 = vld [vmem:[%s868 + $0x18] sm:$0xf]
        %v1660 = vld [vmem:[%s868 + $0x1c] sm:$0xf]
        %v1661 = vld [vmem:[%s871] sm:$0x1]
        %v1663 = vperm.slane %v1661, 0
        %v1673 = vunpack.c.l.b16 %v1653
        %v1674 = vunpack.c.l.b16 %v1654
        %v1675 = vunpack.c.l.b16 %v1655
        %v1676 = vunpack.c.l.b16 %v1656
        %v1677 = vunpack.c.l.b16 %v1657
        %v1678 = vunpack.c.l.b16 %v1658
        %v1679 = vunpack.c.l.b16 %v1659
        %v1680 = vunpack.c.l.b16 %v1660
        %v1681 = vpack.c.b16 %v1674, %v1673
        %v1682 = vpack.c.b16 %v1676, %v1675
        %v1683 = vpack.c.b16 %v1678, %v1677
        %v1684 = vpack.c.b16 %v1680, %v1679
        %vm1689 = vcmask 523264
        %v1691 = vsel %vm1689, %v1652, 0
        %1693 = vmatpush.bf16.msra.mxu0 0
        %1694 = vmatpush.bf16.msra.mxu0 0
        %1695 = vmatpush.bf16.msra.mxu0 0
        %1696 = vmatpush.bf16.msra.mxu0 0
        %1697 = vmatpush.bf16.msra.mxu0 %v1684
        %1698 = vmatpush.bf16.msra.mxu0 %v1683
        %1699 = vmatpush.bf16.msra.mxu0 %v1682
        %1700 = vmatpush.bf16.msra.mxu0 %v1681
        %1701 = vmatmul.bf16.gmra.mxu0 %v1691
        %v1702 = vpop.f32.mrf.mxu0
        %v1703 = vadd.f32 %v1663, %v1702
        %v1704 = vpop.f32.mrf.mxu0
        %1705 = vdwg.mxu0
        %v1706 = vadd.f32 %v1613, %v1703
        %v1707 = vld [vmem:[%s874] sm:$0x1]
        %v1708 = vld [vmem:[%s877] sm:$0x1]
        %v1709 = vsel %vm908, %v1706, 0.0
        %1710 = vadd.xlane.f32.xlu0 %v1709
        %v1711 = vpop.xlane.xlu0 %1710
        %v1712 = vmul.f32 %v1711, %v1586
        %v1713 = vsub.f32 %v1706, %v1712
        %v1714 = vmul.f32 %v1713, %v1713
        %v1715 = vsel %vm908, %v1714, 0.0
        %1716 = vadd.xlane.f32.xlu0 %v1715
        %v1717 = vpop.xlane.xlu0 %1716
        %v1718 = vmul.f32 %v1717, %v1586
        %v1719 = vadd.f32 %v1718, 1e-05
        %v1720 = vrsqrt.pop %v1719
        %v1721 = vmul.f32 %v1720, %v1719
        %v1722 = vmul.f32 %v1721, %v1720
        %v1723 = vmul.f32 0.5, %v1722
        %v1724 = vsub.f32 1.5, %v1723
        %v1725 = vmul.f32 %v1720, %v1724
        %vm1726 = vweird.f32 %v1719
        %vm1727 = vweird.f32 %v1720
        %vm1728 = vmor %vm1726, %vm1727
        %v1729 = vsel %vm1728, %v1720, %v1725
        %v1730 = vmul.f32 %v1713, %v1729
        %v1732 = vperm.slane %v1707, 0
        %v1734 = vmul.f32 %v1730, %v1732
        %v1736 = vperm.slane %v1708, 0
        %v1738 = vadd.f32 %v1734, %v1736
        %v1739 = vpack.c.bf16 %v1738, %v1738
        %vm1740 = vcmask 257024
        %1741 = vst.msk [vmem:[#allocation2] sm:$0xf] %vm1740, %v1739
        %p1742 = scmp.eq.s32.totalorder %s38, 1
        // Predicated region
        $region101: #{face_emotion_transformer.1} parent=95 // pred_check
          %p1743 = pneg %p1742
        $region102: #{face_emotion_transformer.1} parent=95 // pred_check_branch
          %1745 = sbr.rel (%p1743) target = $region104
        $region103: #{face_emotion_transformer.1} parent=95 // pred_region
          %v1746 = vsel %vm908, %v1738, 0.0
          %v1747 = vrot.slane %v1746, 4
          %v1748 = vadd.f32 %v1746, %v1747
          %v1749 = vrot.slane %v1748, 2
          %v1750 = vadd.f32 %v1748, %v1749
          %v1751 = vrot.slane %v1750, 1
          %v1752 = vadd.f32 %v1750, %v1751
          %v1753 = vrcp.pop 8.0
          %v1754 = vmul.f32 8.0, %v1753
          %v1755 = vsub.f32 1.0, %v1754
          %v1756 = vmul.f32 %v1753, %v1755
          %v1757 = vadd.f32 %v1753, %v1756
          %vm1758 = vweird.f32 %v1753
          %v1759 = vsel %vm1758, %v1753, %v1757
          %v1760 = vmul.f32 %v1752, %v1759
          %v1761 = vpack.c.bf16 %v1760, %v1760
          %v1762 = vld [vmem:[%s17] sm:$0xf]
          %v1763 = vld [vmem:[%s17 + $0x4] sm:$0xf]
          %v1764 = vld [vmem:[%s17 + $0x8] sm:$0xf]
          %v1765 = vld [vmem:[%s17 + $0xc] sm:$0xf]
          %v1766 = vld [vmem:[%s18] sm:$0x1]
          %v1771 = vunpack.c.l.b16 %v1762
          %v1772 = vunpack.c.l.b16 %v1763
          %v1773 = vunpack.c.l.b16 %v1764
          %v1774 = vunpack.c.l.b16 %v1765
          %v1775 = vpack.c.b16 %v1772, %v1771
          %v1776 = vpack.c.b16 %v1774, %v1773
          %v1780 = vsel %vm908, %v1761, 0
          %1782 = vmatpush.bf16.msra.mxu0 0
          %1783 = vmatpush.bf16.msra.mxu0 0
          %1784 = vmatpush.bf16.msra.mxu0 0
          %1785 = vmatpush.bf16.msra.mxu0 0
          %1786 = vmatpush.bf16.msra.mxu0 0
          %1787 = vmatpush.bf16.msra.mxu0 0
          %1788 = vmatpush.bf16.msra.mxu0 %v1776
          %1789 = vmatpush.bf16.msra.mxu0 %v1775
          %1790 = vmatmul.bf16.gmra.mxu0 %v1780
          %v1791 = vpop.f32.mrf.mxu0
          %v1792 = vadd.f32 %v1766, %v1791
          %v1793 = vpop.f32.mrf.mxu0
          %1794 = vdwg.mxu0
          %1795 = vst [vmem:[%s810] sm:$0x1] %v1792
        $region104: #{face_emotion_transformer.1} parent=95 // pred_fallthru
          _
        %s1796 = sand.u32 %s537, 1
        %s1797 = scalar_lea.sflag [#allocation4], %s1796
        %s1798 = sand.u32 %s537, 1
        %s1799 = scalar_lea.vmem [#allocation3], %s1798
        // Predicated region
        $region105: #{face_emotion_transformer.1} parent=95 // pred_check
          %p1800 = pneg %p547
        $region106: #{face_emotion_transformer.1} parent=95 // pred_check_branch
          %1802 = sbr.rel (%p1800) target = $region108
        $region107: #{face_emotion_transformer.1} parent=95 // pred_region
          %1804 = vsyncadd %s1797, 0
          %s1805 = scalar_lea.hbm %s19, %s37
          %s1807 = sshll.u32 %s1799, 4
          %s1808 = int_to_ptr.vmem [resolvable:$true] %s1807
          %s1809 = sshll.u32 %s1805, 4
          %s1810 = int_to_ptr.hbm [resolvable:$true] %s1809
          %1812 = dma.vmem_to_hbm [thread:$0]  %s1808, 16, %s1810, %s1797
        $region108: #{face_emotion_transformer.1} parent=95 // pred_fallthru
          _
      $region96: #{face_emotion_transformer.1} parent=5 // pred_fallthru
        _
      %p1813 = scmp.le.s32.totalorder 2, %s28
      // Predicated region
      $region109: #{face_emotion_transformer.1} parent=5 // pred_check
        %p1814 = pneg %p1813
      $region110: #{face_emotion_transformer.1} parent=5 // pred_check_branch
        %1816 = sbr.rel (%p1814) target = $region112
      $region111: #{face_emotion_transformer.1} parent=5 // pred_region
        %s1817 = ssub.s32 %s28, 2
        // Predicated region
        $region113: #{face_emotion_transformer.1} parent=111 // pred_check
          %p1818 = pneg %p553
        $region114: #{face_emotion_transformer.1} parent=111 // pred_check_branch
          %1820 = sbr.rel (%p1818) target = $region116
        $region115: #{face_emotion_transformer.1} parent=111 // pred_region
          %s1821 = sand.u32 %s538, 1
          %s1822 = scalar_lea.sflag [#allocation4], %s1821
          %s1823 = sand.u32 %s538, 1
          %s1824 = scalar_lea.vmem [#allocation3], %s1823
          %1826 = dma.done %s1822, 16
        $region116: #{face_emotion_transformer.1} parent=111 // pred_fallthru
          _
      $region112: #{face_emotion_transformer.1} parent=5 // pred_fallthru
        _
    $region6: #{face_emotion_transformer.1} parent=1 // loop_footer
      %s32 = sadd.s32 1, %s28
    $region7: #{face_emotion_transformer.1} parent=1 // loop_footer_branch
      %27 = sbr.rel target = $region3
    $region8: #{face_emotion_transformer.1} parent=1 // loop_exit
      _
    %1827 = vsyncpa [#allocation4], 1
    %s1828 = scalar_lea.sflag [#allocation4], 1
    %1829 = vsyncpa %s1828, 1

</llo_original>
